<compile_context>
chip_gen: v6e
topology: v6e:2x2x1
jax: 0.10.0
libtpu: 0.0.40
codegen_flags: <defaults>
</compile_context>

<pallas_src>
import functools

import jax
import jax.numpy as jnp
from jax import lax
from jax.experimental import pallas as pl
from jax.experimental.pallas import tpu as pltpu

EPS = 1e-5  # PyTorch BatchNorm1d default


# ----------------------------------------------------------------------------
# Host-side sizing helpers
# ----------------------------------------------------------------------------
def _vmem_budget_bytes():
    """Generation-aware VMEM budget: physical capacity minus ~25% headroom."""
    cap = 64 * 1024 * 1024  # conservative default (v7x-sized)
    try:
        cap = int(getattr(pltpu.get_tpu_info(), "vmem_capacity_bytes", cap))
    except Exception:
        pass
    return max(32 << 20, min((cap * 3) // 4, 112 << 20))


def _pick_chunk(n_batch, length, cin, cout, budget_bytes, target_lanes=2048):
    """Batch elements per grid step in the folded (C, N*L) layout.

    Tiles hold whole batch elements (so the periodic boundary mask alone makes
    the k=3 'same' padding correct -- no halo DMA), have a lane width that is a
    multiple of 128 when tiled, fit the VMEM budget, and are large enough
    (>=512 lanes preferred) to stay near the HBM roofline.
    """
    per_elem = 4 * length * (cin + cout) * 8  # f32, dbl-buffered in/out + taps
    cands = []
    for n in range(1, n_batch + 1):
        if n_batch % n:
            continue
        if n < n_batch and (n * length) % 128:
            continue  # tiled (non-full) blocks must be lane-aligned
        if n < n_batch and n * per_elem > budget_bytes:
            continue
        cands.append(n)
    within = [n for n in cands if n * length <= target_lanes]
    if within:
        return max(within)
    # TODO(synk): sub-L tiling with a 1-lane halo for the case where even a
    # single (C, L) slab exceeds the VMEM budget.
    return min(cands) if cands else n_batch


# ----------------------------------------------------------------------------
# In-kernel helpers
# ----------------------------------------------------------------------------
def _conv1d_k3(x, w, bias, length, cin, cout):
    """Conv1d(kernel_size=3, padding=1) on a folded block.

    x: (cin, T) f32, T = n*length (whole batch elements along lanes).
    w: (cout, 3*cin) f32, lane index = k*cin + ci  (tap k=0 -> x[l-1]).
    bias: (cout, 1) f32.  Returns (cout, T) f32.
    """
    T = x.shape[1]
    pos = lax.broadcasted_iota(jnp.int32, (1, T), 1)
    is_first = (pos % length) == 0              # start of each batch element
    is_last = (pos % length) == (length - 1)    # end of each batch element
    # Two whole-block XLU rolls + two hoisted VPU selects (conv zero padding).
    xm1 = jnp.where(is_first, 0.0, pltpu.roll(x, 1, 1))       # x[l-1]
    xp1 = jnp.where(is_last, 0.0, pltpu.roll(x, T - 1, 1))    # x[l+1]
    taps = (xm1, x, xp1)

    # Accumulate directly in (cout, T) layout: 3*cin broadcast FMAs.
    # Bias is folded in as the accumulator init (free).
    acc = jnp.broadcast_to(bias, (cout, T))
    for k in range(3):
        tap = taps[k]
        for ci in range(cin):
            idx = k * cin + ci
            wcol = w[:, idx:idx + 1]                 # (cout, 1)
            acc = acc + wcol * tap[ci:ci + 1, :]     # (cout,1)*(1,T) -> (cout,T)
    # TODO(synk): switch to an im2col MXU matmul path if channels grow >~32-64.
    return acc


def _conv_bn_stats_kernel(cin, cout, length, prenorm, *refs):
    """One tile: (optional bn+relu of the input), conv k=3, per-channel stats."""
    if prenorm:
        (x_ref, a_ref, c_ref, w_ref, b_ref,
         y_ref, stats_ref, sum_sc, ss_sc) = refs
    else:
        (x_ref, w_ref, b_ref, y_ref, stats_ref, sum_sc, ss_sc) = refs
        a_ref = c_ref = None

    step = pl.program_id(0)

    @pl.when(step == 0)
    def _():
        sum_sc[...] = jnp.zeros_like(sum_sc)
        ss_sc[...] = jnp.zeros_like(ss_sc)

    x = x_ref[...]                                            # (cin, T)
    if prenorm:  # previous layer's BN + ReLU, folded into one FMA + max
        x = jnp.maximum(a_ref[...] * x + c_ref[...], 0.0)

    y = _conv1d_k3(x, w_ref[...], b_ref[...], length, cin, cout)   # (cout, T)
    y_ref[...] = y

    # Carried one-pass BN statistics (per-channel sum / sum of squares).
    sum_sc[...] += jnp.sum(y, axis=1, keepdims=True)
    ss_sc[...] += jnp.sum(y * y, axis=1, keepdims=True)

    @pl.when(step == pl.num_programs(0) - 1)
    def _():
        stats_ref[...] = jnp.concatenate([sum_sc[...], ss_sc[...]], axis=1)


def _norm_relu_kernel(y_ref, a_ref, c_ref, o_ref):
    """Final BN (pre-folded affine) + ReLU, purely elementwise."""
    o_ref[...] = jnp.maximum(a_ref[...] * y_ref[...] + c_ref[...], 0.0)


# ----------------------------------------------------------------------------
# Host-side wrapper
# ----------------------------------------------------------------------------
def _bn_coeffs(stats, gamma, beta, count):
    """Fold train-mode BN into per-channel affine y*a + c (tiny host-side math)."""
    mean = stats[:, 0] / count
    # One-pass E[y^2] - E[y]^2, clamped >= 0 against f32 cancellation.
    var = jnp.maximum(stats[:, 1] / count - mean * mean, 0.0)
    a = gamma / jnp.sqrt(var + EPS)
    c = beta - mean * a
    return a[:, None], c[:, None]                             # (C, 1)


@jax.jit
def conv_block_1d(x_ncl, params):
    """x_ncl: (N, Cin, L) float32 (PyTorch layout). Returns (N, Cout, L)."""
    w1, b1, g1, be1, w2, b2, g2, be2 = params
    N, Cin, L = x_ncl.shape
    Cout = w1.shape[0]
    NL = N * L

    budget = _vmem_budget_bytes()
    n_chunk = _pick_chunk(N, L, Cin, Cout, budget)
    num_tiles = N // n_chunk
    T = n_chunk * L

    cp_reduce = pltpu.CompilerParams(
        dimension_semantics=("arbitrary",), vmem_limit_bytes=budget)
    cp_parallel = pltpu.CompilerParams(
        dimension_semantics=("parallel",), vmem_limit_bytes=budget)

    # Fold batch into the lane axis: (Cin, N*L) -> lane-dense even for short L.
    x_f = jnp.transpose(x_ncl.astype(jnp.float32), (1, 0, 2)).reshape(Cin, NL)

    def conv_pass(inp, cin, w, b, a=None, c=None):
        prenorm = a is not None
        kern = functools.partial(_conv_bn_stats_kernel, cin, Cout, L, prenorm)
        in_specs = [pl.BlockSpec((cin, T), lambda i: (0, i))]
        args = [inp]
        if prenorm:
            in_specs += [pl.BlockSpec((cin, 1), lambda i: (0, 0))] * 2
            args += [a, c]
        in_specs += [pl.BlockSpec((Cout, 3 * cin), lambda i: (0, 0)),
                     pl.BlockSpec((Cout, 1), lambda i: (0, 0))]
        args += [w, b]
        y, stats = pl.pallas_call(
            kern,
            grid=(num_tiles,),
            in_specs=in_specs,
            out_specs=[pl.BlockSpec((Cout, T), lambda i: (0, i)),
                       pl.BlockSpec((Cout, 2), lambda i: (0, 0))],
            out_shape=[jax.ShapeDtypeStruct((Cout, NL), jnp.float32),
                       jax.ShapeDtypeStruct((Cout, 2), jnp.float32)],
            scratch_shapes=[pltpu.VMEM((Cout, 1), jnp.float32),
                            pltpu.VMEM((Cout, 1), jnp.float32)],
            compiler_params=cp_reduce,
        )(*args)
        return y, stats

    # Pass 1: conv1 (+bias) and BN1 batch statistics.
    y1, st1 = conv_pass(x_f, Cin, w1, b1)
    a1, c1 = _bn_coeffs(st1, g1, be1, NL)

    # Pass 2: bn1+relu fused into conv2 (+bias) and BN2 batch statistics.
    y2, st2 = conv_pass(y1, Cout, w2, b2, a1, c1)
    a2, c2 = _bn_coeffs(st2, g2, be2, NL)

    # Pass 3: bn2 + relu (elementwise; tiles independent -> parallel axis).
    out_f = pl.pallas_call(
        _norm_relu_kernel,
        grid=(num_tiles,),
        in_specs=[pl.BlockSpec((Cout, T), lambda i: (0, i)),
                  pl.BlockSpec((Cout, 1), lambda i: (0, 0)),
                  pl.BlockSpec((Cout, 1), lambda i: (0, 0))],
        out_specs=pl.BlockSpec((Cout, T), lambda i: (0, i)),
        out_shape=jax.ShapeDtypeStruct((Cout, NL), jnp.float32),
        compiler_params=cp_parallel,
    )(y2, a2, c2)

    # Un-fold back to PyTorch NCL layout.
    return out_f.reshape(Cout, N, L).transpose(1, 0, 2)


# ----------------------------------------------------------------------------
# Parameters and plain-JAX reference (mirrors the PyTorch forward, train-mode BN)
# ----------------------------------------------------------------------------
def make_params(key, cin, cout):
    ks = jax.random.split(key, 8)
    # PyTorch shapes: Conv1d weight (Cout, Cin, 3), bias (Cout,).
    w1_t = jax.random.normal(ks[0], (cout, cin, 3), jnp.float32) * 0.1
    b1_t = jax.random.normal(ks[1], (cout,), jnp.float32) * 0.1
    w2_t = jax.random.normal(ks[2], (cout, cout, 3), jnp.float32) * 0.1
    b2_t = jax.random.normal(ks[3], (cout,), jnp.float32) * 0.1
    g1 = 1.0 + 0.1 * jax.random.normal(ks[4], (cout,), jnp.float32)
    be1 = 0.1 * jax.random.normal(ks[5], (cout,), jnp.float32)
    g2 = 1.0 + 0.1 * jax.random.normal(ks[6], (cout,), jnp.float32)
    be2 = 0.1 * jax.random.normal(ks[7], (cout,), jnp.float32)

    # Kernel layout: weights as (Cout, 3*Cin) with lane index = k*Cin + ci,
    # so each (k, ci) weight column is a cheap static lane slice in-kernel.
    w1k = jnp.transpose(w1_t, (0, 2, 1)).reshape(cout, 3 * cin)
    w2k = jnp.transpose(w2_t, (0, 2, 1)).reshape(cout, 3 * cout)
    b1k = b1_t[:, None]
    b2k = b2_t[:, None]

    kernel_params = (w1k, b1k, g1, be1, w2k, b2k, g2, be2)
    ref_params = (w1_t, b1_t, g1, be1, w2_t, b2_t, g2, be2)
    return kernel_params, ref_params


def reference_conv_block_1d(x_ncl, ref_params):
    w1, b1, g1, be1, w2, b2, g2, be2 = ref_params

    def conv(x, w, b):
        y = lax.conv_general_dilated(
            x, w, window_strides=(1,), padding=[(1, 1)],
            dimension_numbers=('NCH', 'OIH', 'NCH'),
            precision=lax.Precision.HIGHEST)
        return y + b[None, :, None]

    def bn_relu(y, g, be):
        mean = jnp.mean(y, axis=(0, 2), keepdims=True)
        var = jnp.mean((y - mean) ** 2, axis=(0, 2), keepdims=True)
        yn = (y - mean) / jnp.sqrt(var + EPS)
        return jnp.maximum(yn * g[None, :, None] + be[None, :, None], 0.0)

    h = bn_relu(conv(x_ncl, w1, b1), g1, be1)
    return bn_relu(conv(h, w2, b2), g2, be2)


if __name__ == "__main__":
    root = jax.random.PRNGKey(0)

    # Small shape implied by the module (batch=2, in=4, out=8, length=16) plus
    # a second shape that exercises the multi-tile grid / carried BN stats.
    shapes = [(2, 4, 8, 16), (8, 4, 8, 512)]
    for idx, (n, cin, cout, length) in enumerate(shapes):
        kx, kp = jax.random.split(jax.random.fold_in(root, idx))
        x = jax.random.normal(kx, (n, cin, length), jnp.float32)
        kernel_params, ref_params = make_params(kp, cin, cout)

        out = jax.block_until_ready(conv_block_1d(x, kernel_params))
        ref = reference_conv_block_1d(x, ref_params)

        assert out.shape == (n, cout, length)
        assert jnp.allclose(out, ref, atol=2e-4, rtol=2e-4), \
            f"mismatch vs JAX reference at shape {(n, cin, cout, length)}"

    print("KERNEL_OK")
</pallas_src>

<mosaic_0001>
module attributes {stable_mosaic.version = 11 : i64} {
  func.func @_conv_bn_stats_kernel(%arg0: i32, %arg1: memref<4x32xf32, #tpu.memory_space<vmem>>, %arg2: memref<8x12xf32, #tpu.memory_space<vmem>>, %arg3: memref<8x1xf32, #tpu.memory_space<vmem>>, %arg4: memref<8x32xf32, #tpu.memory_space<vmem>>, %arg5: memref<8x2xf32, #tpu.memory_space<vmem>>, %arg6: memref<8x1xf32, #tpu.memory_space<vmem>>, %arg7: memref<8x1xf32, #tpu.memory_space<vmem>>) attributes {dimension_semantics = [#tpu.dimension_semantics<arbitrary>], iteration_bounds = array<i64: 1>, scalar_prefetch = 0 : i64, scratch_operands = 2 : i64, tpu.core_type = #tpu.core_type<tc>, window_params = [{transform_indices = @transform_0, window_bounds = array<i64: 4, 32>}, {pipeline_mode = #tpu.pipeline_mode<synchronous>, transform_indices = @transform_1, window_bounds = array<i64: 8, 12>}, {pipeline_mode = #tpu.pipeline_mode<synchronous>, transform_indices = @transform_2, window_bounds = array<i64: 8, 1>}, {transform_indices = @transform_3, window_bounds = array<i64: 8, 32>}, {pipeline_mode = #tpu.pipeline_mode<synchronous>, transform_indices = @transform_4, window_bounds = array<i64: 8, 2>}]} {
    %c0_i32 = arith.constant 0 : i32
    %0 = arith.cmpi eq, %arg0, %c0_i32 : i32
    %1 = arith.extui %0 : i1 to i32
    %c0_i32_0 = arith.constant 0 : i32
    %2 = arith.cmpi ne, %1, %c0_i32_0 : i32
    scf.if %2 {
      %cst_33 = arith.constant 0.000000e+00 : f32
      %142 = vector.broadcast %cst_33 : f32 to vector<8x1xf32>
      %c0_34 = arith.constant 0 : index
      %c0_35 = arith.constant 0 : index
      %143 = vector.load %arg6[%c0_34, %c0_35] : memref<8x1xf32, #tpu.memory_space<vmem>>, vector<8x1xf32>
      tpu.vector_store %arg6[%c0_34, %c0_35], %142 {strides = array<i32>} : memref<8x1xf32, #tpu.memory_space<vmem>>, vector<8x1xf32>,
      %cst_36 = arith.constant 0.000000e+00 : f32
      %144 = vector.broadcast %cst_36 : f32 to vector<8x1xf32>
      %c0_37 = arith.constant 0 : index
      %c0_38 = arith.constant 0 : index
      %145 = vector.load %arg7[%c0_37, %c0_38] : memref<8x1xf32, #tpu.memory_space<vmem>>, vector<8x1xf32>
      tpu.vector_store %arg7[%c0_37, %c0_38], %144 {strides = array<i32>} : memref<8x1xf32, #tpu.memory_space<vmem>>, vector<8x1xf32>,
    } else {
    }
    %c0 = arith.constant 0 : index
    %c0_1 = arith.constant 0 : index
    %3 = vector.load %arg1[%c0, %c0_1] : memref<4x32xf32, #tpu.memory_space<vmem>>, vector<4x32xf32>
    %c0_2 = arith.constant 0 : index
    %c0_3 = arith.constant 0 : index
    %4 = vector.load %arg2[%c0_2, %c0_3] : memref<8x12xf32, #tpu.memory_space<vmem>>, vector<8x12xf32>
    %c0_4 = arith.constant 0 : index
    %c0_5 = arith.constant 0 : index
    %5 = vector.load %arg3[%c0_4, %c0_5] : memref<8x1xf32, #tpu.memory_space<vmem>>, vector<8x1xf32>
    %6 = tpu.iota {dimensions = array<i32: 1>} : vector<1x32xi32>
    %c16_i32 = arith.constant 16 : i32
    %c0_i32_6 = arith.constant 0 : i32
    %7 = arith.cmpi eq, %c16_i32, %c0_i32_6 : i32
    %c1_i32 = arith.constant 1 : i32
    %8 = arith.select %7, %c1_i32, %c16_i32 : i32
    %9 = vector.broadcast %8 : i32 to vector<1x32xi32>
    %10 = arith.remsi %6, %9 : vector<1x32xi32>
    %c0_i32_7 = arith.constant 0 : i32
    %11 = vector.broadcast %c0_i32_7 : i32 to vector<1x32xi32>
    %12 = arith.cmpi ne, %10, %11 : vector<1x32xi32>
    %c0_i32_8 = arith.constant 0 : i32
    %13 = vector.broadcast %c0_i32_8 : i32 to vector<1x32xi32>
    %14 = arith.cmpi slt, %10, %13 : vector<1x32xi32>
    %c0_i32_9 = arith.constant 0 : i32
    %15 = arith.cmpi slt, %8, %c0_i32_9 : i32
    %16 = vector.broadcast %15 : i1 to vector<1x32xi1>
    %17 = vector.broadcast %16 : vector<1x32xi1> to vector<1x32xi1>
    %18 = arith.xori %14, %17 : vector<1x32xi1>
    %19 = arith.andi %18, %12 : vector<1x32xi1>
    %20 = vector.broadcast %8 : i32 to vector<1x32xi32>
    %21 = arith.addi %10, %20 : vector<1x32xi32>
    %22 = arith.select %19, %21, %10 : vector<1x32xi1>, vector<1x32xi32>
    %c0_i32_10 = arith.constant 0 : i32
    %23 = vector.broadcast %c0_i32_10 : i32 to vector<1x32xi32>
    %24 = arith.cmpi eq, %22, %23 : vector<1x32xi32>
    %c16_i32_11 = arith.constant 16 : i32
    %c0_i32_12 = arith.constant 0 : i32
    %25 = arith.cmpi eq, %c16_i32_11, %c0_i32_12 : i32
    %c1_i32_13 = arith.constant 1 : i32
    %26 = arith.select %25, %c1_i32_13, %c16_i32_11 : i32
    %27 = vector.broadcast %26 : i32 to vector<1x32xi32>
    %28 = arith.remsi %6, %27 : vector<1x32xi32>
    %c0_i32_14 = arith.constant 0 : i32
    %29 = vector.broadcast %c0_i32_14 : i32 to vector<1x32xi32>
    %30 = arith.cmpi ne, %28, %29 : vector<1x32xi32>
    %c0_i32_15 = arith.constant 0 : i32
    %31 = vector.broadcast %c0_i32_15 : i32 to vector<1x32xi32>
    %32 = arith.cmpi slt, %28, %31 : vector<1x32xi32>
    %c0_i32_16 = arith.constant 0 : i32
    %33 = arith.cmpi slt, %26, %c0_i32_16 : i32
    %34 = vector.broadcast %33 : i1 to vector<1x32xi1>
    %35 = vector.broadcast %34 : vector<1x32xi1> to vector<1x32xi1>
    %36 = arith.xori %32, %35 : vector<1x32xi1>
    %37 = arith.andi %36, %30 : vector<1x32xi1>
    %38 = vector.broadcast %26 : i32 to vector<1x32xi32>
    %39 = arith.addi %28, %38 : vector<1x32xi32>
    %40 = arith.select %37, %39, %28 : vector<1x32xi1>, vector<1x32xi32>
    %c15_i32 = arith.constant 15 : i32
    %41 = vector.broadcast %c15_i32 : i32 to vector<1x32xi32>
    %42 = arith.cmpi eq, %40, %41 : vector<1x32xi32>
    %c1_i32_17 = arith.constant 1 : i32
    %43 = tpu.dynamic_rotate %3 by %c1_i32_17 dim 1 : vector<4x32xf32>, i32 -> vector<4x32xf32>
    %cst = arith.constant 0.000000e+00 : f32
    %44 = vector.shape_cast %24 : vector<1x32xi1> to vector<1x32xi1>
    %45 = vector.broadcast %44 : vector<1x32xi1> to vector<4x32xi1>
    %46 = vector.broadcast %cst : f32 to vector<4x32xf32>
    %47 = arith.select %45, %46, %43 : vector<4x32xi1>, vector<4x32xf32>
    %c31_i32 = arith.constant 31 : i32
    %48 = tpu.dynamic_rotate %3 by %c31_i32 dim 1 : vector<4x32xf32>, i32 -> vector<4x32xf32>
    %cst_18 = arith.constant 0.000000e+00 : f32
    %49 = vector.shape_cast %42 : vector<1x32xi1> to vector<1x32xi1>
    %50 = vector.broadcast %49 : vector<1x32xi1> to vector<4x32xi1>
    %51 = vector.broadcast %cst_18 : f32 to vector<4x32xf32>
    %52 = arith.select %50, %51, %48 : vector<4x32xi1>, vector<4x32xf32>
    %53 = vector.shape_cast %5 : vector<8x1xf32> to vector<8x1xf32>
    %54 = vector.broadcast %53 : vector<8x1xf32> to vector<8x32xf32>
    %55 = vector.extract_strided_slice %4 {offsets = [0, 0], sizes = [8, 1], strides = [1, 1]} : vector<8x12xf32> to vector<8x1xf32>
    %56 = vector.extract_strided_slice %47 {offsets = [0, 0], sizes = [1, 32], strides = [1, 1]} : vector<4x32xf32> to vector<1x32xf32>
    %57 = vector.broadcast %55 : vector<8x1xf32> to vector<8x32xf32>
    %58 = vector.broadcast %56 : vector<1x32xf32> to vector<8x32xf32>
    %59 = arith.mulf %57, %58 : vector<8x32xf32>
    %60 = arith.addf %54, %59 : vector<8x32xf32>
    %61 = vector.extract_strided_slice %4 {offsets = [0, 1], sizes = [8, 1], strides = [1, 1]} : vector<8x12xf32> to vector<8x1xf32>
    %62 = vector.extract_strided_slice %47 {offsets = [1, 0], sizes = [1, 32], strides = [1, 1]} : vector<4x32xf32> to vector<1x32xf32>
    %63 = vector.broadcast %61 : vector<8x1xf32> to vector<8x32xf32>
    %64 = vector.broadcast %62 : vector<1x32xf32> to vector<8x32xf32>
    %65 = arith.mulf %63, %64 : vector<8x32xf32>
    %66 = arith.addf %60, %65 : vector<8x32xf32>
    %67 = vector.extract_strided_slice %4 {offsets = [0, 2], sizes = [8, 1], strides = [1, 1]} : vector<8x12xf32> to vector<8x1xf32>
    %68 = vector.extract_strided_slice %47 {offsets = [2, 0], sizes = [1, 32], strides = [1, 1]} : vector<4x32xf32> to vector<1x32xf32>
    %69 = vector.broadcast %67 : vector<8x1xf32> to vector<8x32xf32>
    %70 = vector.broadcast %68 : vector<1x32xf32> to vector<8x32xf32>
    %71 = arith.mulf %69, %70 : vector<8x32xf32>
    %72 = arith.addf %66, %71 : vector<8x32xf32>
    %73 = vector.extract_strided_slice %4 {offsets = [0, 3], sizes = [8, 1], strides = [1, 1]} : vector<8x12xf32> to vector<8x1xf32>
    %74 = vector.extract_strided_slice %47 {offsets = [3, 0], sizes = [1, 32], strides = [1, 1]} : vector<4x32xf32> to vector<1x32xf32>
    %75 = vector.broadcast %73 : vector<8x1xf32> to vector<8x32xf32>
    %76 = vector.broadcast %74 : vector<1x32xf32> to vector<8x32xf32>
    %77 = arith.mulf %75, %76 : vector<8x32xf32>
    %78 = arith.addf %72, %77 : vector<8x32xf32>
    %79 = vector.extract_strided_slice %4 {offsets = [0, 4], sizes = [8, 1], strides = [1, 1]} : vector<8x12xf32> to vector<8x1xf32>
    %80 = vector.extract_strided_slice %3 {offsets = [0, 0], sizes = [1, 32], strides = [1, 1]} : vector<4x32xf32> to vector<1x32xf32>
    %81 = vector.broadcast %79 : vector<8x1xf32> to vector<8x32xf32>
    %82 = vector.broadcast %80 : vector<1x32xf32> to vector<8x32xf32>
    %83 = arith.mulf %81, %82 : vector<8x32xf32>
    %84 = arith.addf %78, %83 : vector<8x32xf32>
    %85 = vector.extract_strided_slice %4 {offsets = [0, 5], sizes = [8, 1], strides = [1, 1]} : vector<8x12xf32> to vector<8x1xf32>
    %86 = vector.extract_strided_slice %3 {offsets = [1, 0], sizes = [1, 32], strides = [1, 1]} : vector<4x32xf32> to vector<1x32xf32>
    %87 = vector.broadcast %85 : vector<8x1xf32> to vector<8x32xf32>
    %88 = vector.broadcast %86 : vector<1x32xf32> to vector<8x32xf32>
    %89 = arith.mulf %87, %88 : vector<8x32xf32>
    %90 = arith.addf %84, %89 : vector<8x32xf32>
    %91 = vector.extract_strided_slice %4 {offsets = [0, 6], sizes = [8, 1], strides = [1, 1]} : vector<8x12xf32> to vector<8x1xf32>
    %92 = vector.extract_strided_slice %3 {offsets = [2, 0], sizes = [1, 32], strides = [1, 1]} : vector<4x32xf32> to vector<1x32xf32>
    %93 = vector.broadcast %91 : vector<8x1xf32> to vector<8x32xf32>
    %94 = vector.broadcast %92 : vector<1x32xf32> to vector<8x32xf32>
    %95 = arith.mulf %93, %94 : vector<8x32xf32>
    %96 = arith.addf %90, %95 : vector<8x32xf32>
    %97 = vector.extract_strided_slice %4 {offsets = [0, 7], sizes = [8, 1], strides = [1, 1]} : vector<8x12xf32> to vector<8x1xf32>
    %98 = vector.extract_strided_slice %3 {offsets = [3, 0], sizes = [1, 32], strides = [1, 1]} : vector<4x32xf32> to vector<1x32xf32>
    %99 = vector.broadcast %97 : vector<8x1xf32> to vector<8x32xf32>
    %100 = vector.broadcast %98 : vector<1x32xf32> to vector<8x32xf32>
    %101 = arith.mulf %99, %100 : vector<8x32xf32>
    %102 = arith.addf %96, %101 : vector<8x32xf32>
    %103 = vector.extract_strided_slice %4 {offsets = [0, 8], sizes = [8, 1], strides = [1, 1]} : vector<8x12xf32> to vector<8x1xf32>
    %104 = vector.extract_strided_slice %52 {offsets = [0, 0], sizes = [1, 32], strides = [1, 1]} : vector<4x32xf32> to vector<1x32xf32>
    %105 = vector.broadcast %103 : vector<8x1xf32> to vector<8x32xf32>
    %106 = vector.broadcast %104 : vector<1x32xf32> to vector<8x32xf32>
    %107 = arith.mulf %105, %106 : vector<8x32xf32>
    %108 = arith.addf %102, %107 : vector<8x32xf32>
    %109 = vector.extract_strided_slice %4 {offsets = [0, 9], sizes = [8, 1], strides = [1, 1]} : vector<8x12xf32> to vector<8x1xf32>
    %110 = vector.extract_strided_slice %52 {offsets = [1, 0], sizes = [1, 32], strides = [1, 1]} : vector<4x32xf32> to vector<1x32xf32>
    %111 = vector.broadcast %109 : vector<8x1xf32> to vector<8x32xf32>
    %112 = vector.broadcast %110 : vector<1x32xf32> to vector<8x32xf32>
    %113 = arith.mulf %111, %112 : vector<8x32xf32>
    %114 = arith.addf %108, %113 : vector<8x32xf32>
    %115 = vector.extract_strided_slice %4 {offsets = [0, 10], sizes = [8, 1], strides = [1, 1]} : vector<8x12xf32> to vector<8x1xf32>
    %116 = vector.extract_strided_slice %52 {offsets = [2, 0], sizes = [1, 32], strides = [1, 1]} : vector<4x32xf32> to vector<1x32xf32>
    %117 = vector.broadcast %115 : vector<8x1xf32> to vector<8x32xf32>
    %118 = vector.broadcast %116 : vector<1x32xf32> to vector<8x32xf32>
    %119 = arith.mulf %117, %118 : vector<8x32xf32>
    %120 = arith.addf %114, %119 : vector<8x32xf32>
    %121 = vector.extract_strided_slice %4 {offsets = [0, 11], sizes = [8, 1], strides = [1, 1]} : vector<8x12xf32> to vector<8x1xf32>
    %122 = vector.extract_strided_slice %52 {offsets = [3, 0], sizes = [1, 32], strides = [1, 1]} : vector<4x32xf32> to vector<1x32xf32>
    %123 = vector.broadcast %121 : vector<8x1xf32> to vector<8x32xf32>
    %124 = vector.broadcast %122 : vector<1x32xf32> to vector<8x32xf32>
    %125 = arith.mulf %123, %124 : vector<8x32xf32>
    %126 = arith.addf %120, %125 : vector<8x32xf32>
    %c0_19 = arith.constant 0 : index
    %c0_20 = arith.constant 0 : index
    %127 = vector.load %arg4[%c0_19, %c0_20] : memref<8x32xf32, #tpu.memory_space<vmem>>, vector<8x32xf32>
    tpu.vector_store %arg4[%c0_19, %c0_20], %126 {strides = array<i32>} : memref<8x32xf32, #tpu.memory_space<vmem>>, vector<8x32xf32>,
    %c0_21 = arith.constant 0 : index
    %c0_22 = arith.constant 0 : index
    %128 = vector.load %arg6[%c0_21, %c0_22] : memref<8x1xf32, #tpu.memory_space<vmem>>, vector<8x1xf32>
    %cst_23 = arith.constant dense<0.000000e+00> : vector<8xf32>
    %129 = vector.multi_reduction <add>, %126, %cst_23 [1] : vector<8x32xf32> to vector<8xf32>
    %130 = vector.shape_cast %129 : vector<8xf32> to vector<8x1xf32>
    %131 = arith.addf %128, %130 : vector<8x1xf32>
    %c0_24 = arith.constant 0 : index
    %c0_25 = arith.constant 0 : index
    %132 = vector.load %arg6[%c0_24, %c0_25] : memref<8x1xf32, #tpu.memory_space<vmem>>, vector<8x1xf32>
    tpu.vector_store %arg6[%c0_24, %c0_25], %131 {strides = array<i32>} : memref<8x1xf32, #tpu.memory_space<vmem>>, vector<8x1xf32>,
    %c0_26 = arith.constant 0 : index
    %c0_27 = arith.constant 0 : index
    %133 = vector.load %arg7[%c0_26, %c0_27] : memref<8x1xf32, #tpu.memory_space<vmem>>, vector<8x1xf32>
    %134 = arith.mulf %126, %126 : vector<8x32xf32>
    %cst_28 = arith.constant dense<0.000000e+00> : vector<8xf32>
    %135 = vector.multi_reduction <add>, %134, %cst_28 [1] : vector<8x32xf32> to vector<8xf32>
    %136 = vector.shape_cast %135 : vector<8xf32> to vector<8x1xf32>
    %137 = arith.addf %133, %136 : vector<8x1xf32>
    %c0_29 = arith.constant 0 : index
    %c0_30 = arith.constant 0 : index
    %138 = vector.load %arg7[%c0_29, %c0_30] : memref<8x1xf32, #tpu.memory_space<vmem>>, vector<8x1xf32>
    tpu.vector_store %arg7[%c0_29, %c0_30], %137 {strides = array<i32>} : memref<8x1xf32, #tpu.memory_space<vmem>>, vector<8x1xf32>,
    %c0_i32_31 = arith.constant 0 : i32
    %139 = arith.cmpi eq, %arg0, %c0_i32_31 : i32
    %140 = arith.extui %139 : i1 to i32
    %c0_i32_32 = arith.constant 0 : i32
    %141 = arith.cmpi ne, %140, %c0_i32_32 : i32
    scf.if %141 {
      %c0_33 = arith.constant 0 : index
      %c0_34 = arith.constant 0 : index
      %142 = vector.load %arg6[%c0_33, %c0_34] : memref<8x1xf32, #tpu.memory_space<vmem>>, vector<8x1xf32>
      %c0_35 = arith.constant 0 : index
      %c0_36 = arith.constant 0 : index
      %143 = vector.load %arg7[%c0_35, %c0_36] : memref<8x1xf32, #tpu.memory_space<vmem>>, vector<8x1xf32>
      %144 = tpu.concatenate %142, %143 in 1 : vector<8x1xf32>, vector<8x1xf32> -> vector<8x2xf32>
      %c0_37 = arith.constant 0 : index
      %c0_38 = arith.constant 0 : index
      %145 = vector.load %arg5[%c0_37, %c0_38] : memref<8x2xf32, #tpu.memory_space<vmem>>, vector<8x2xf32>
      tpu.vector_store %arg5[%c0_37, %c0_38], %144 {strides = array<i32>} : memref<8x2xf32, #tpu.memory_space<vmem>>, vector<8x2xf32>,
    } else {
    }
    return
  }
  func.func @transform_0(%arg0: i32) -> (i32, i32) {
    %c0_i32 = arith.constant 0 : i32
    %c0_i32_0 = arith.constant 0 : i32
    return %c0_i32, %arg0 : i32, i32
  }
  func.func @transform_1(%arg0: i32) -> (i32, i32) {
    %c0_i32 = arith.constant 0 : i32
    %c0_i32_0 = arith.constant 0 : i32
    %c0_i32_1 = arith.constant 0 : i32
    return %c0_i32, %c0_i32_0 : i32, i32
  }
  func.func @transform_2(%arg0: i32) -> (i32, i32) {
    %c0_i32 = arith.constant 0 : i32
    %c0_i32_0 = arith.constant 0 : i32
    %c0_i32_1 = arith.constant 0 : i32
    return %c0_i32, %c0_i32_0 : i32, i32
  }
  func.func @transform_3(%arg0: i32) -> (i32, i32) {
    %c0_i32 = arith.constant 0 : i32
    %c0_i32_0 = arith.constant 0 : i32
    return %c0_i32, %arg0 : i32, i32
  }
  func.func @transform_4(%arg0: i32) -> (i32, i32) {
    %c0_i32 = arith.constant 0 : i32
    %c0_i32_0 = arith.constant 0 : i32
    %c0_i32_1 = arith.constant 0 : i32
    return %c0_i32, %c0_i32_0 : i32, i32
  }
}

module attributes {stable_mosaic.version = 11 : i64} {
  func.func @_norm_relu_kernel(%arg0: i32, %arg1: memref<8x32xf32, #tpu.memory_space<vmem>>, %arg2: memref<8x1xf32, #tpu.memory_space<vmem>>, %arg3: memref<8x1xf32, #tpu.memory_space<vmem>>, %arg4: memref<8x32xf32, #tpu.memory_space<vmem>>) attributes {dimension_semantics = [#tpu.dimension_semantics<parallel>], iteration_bounds = array<i64: 1>, scalar_prefetch = 0 : i64, scratch_operands = 0 : i64, tpu.core_type = #tpu.core_type<tc>, window_params = [{transform_indices = @transform_0, window_bounds = array<i64: 8, 32>}, {pipeline_mode = #tpu.pipeline_mode<synchronous>, transform_indices = @transform_1, window_bounds = array<i64: 8, 1>}, {pipeline_mode = #tpu.pipeline_mode<synchronous>, transform_indices = @transform_2, window_bounds = array<i64: 8, 1>}, {transform_indices = @transform_3, window_bounds = array<i64: 8, 32>}]} {
    %c0 = arith.constant 0 : index
    %c0_0 = arith.constant 0 : index
    %0 = vector.load %arg2[%c0, %c0_0] : memref<8x1xf32, #tpu.memory_space<vmem>>, vector<8x1xf32>
    %c0_1 = arith.constant 0 : index
    %c0_2 = arith.constant 0 : index
    %1 = vector.load %arg1[%c0_1, %c0_2] : memref<8x32xf32, #tpu.memory_space<vmem>>, vector<8x32xf32>
    %2 = vector.broadcast %0 : vector<8x1xf32> to vector<8x32xf32>
    %3 = arith.mulf %2, %1 : vector<8x32xf32>
    %c0_3 = arith.constant 0 : index
    %c0_4 = arith.constant 0 : index
    %4 = vector.load %arg3[%c0_3, %c0_4] : memref<8x1xf32, #tpu.memory_space<vmem>>, vector<8x1xf32>
    %5 = vector.broadcast %4 : vector<8x1xf32> to vector<8x32xf32>
    %6 = arith.addf %3, %5 : vector<8x32xf32>
    %cst = arith.constant 0.000000e+00 : f32
    %7 = vector.broadcast %cst : f32 to vector<8x32xf32>
    %8 = arith.maximumf %6, %7 : vector<8x32xf32>
    %c0_5 = arith.constant 0 : index
    %c0_6 = arith.constant 0 : index
    %9 = vector.load %arg4[%c0_5, %c0_6] : memref<8x32xf32, #tpu.memory_space<vmem>>, vector<8x32xf32>
    tpu.vector_store %arg4[%c0_5, %c0_6], %8 {strides = array<i32>} : memref<8x32xf32, #tpu.memory_space<vmem>>, vector<8x32xf32>,
    return
  }
  func.func @transform_0(%arg0: i32) -> (i32, i32) {
    %c0_i32 = arith.constant 0 : i32
    %c0_i32_0 = arith.constant 0 : i32
    return %c0_i32, %arg0 : i32, i32
  }
  func.func @transform_1(%arg0: i32) -> (i32, i32) {
    %c0_i32 = arith.constant 0 : i32
    %c0_i32_0 = arith.constant 0 : i32
    %c0_i32_1 = arith.constant 0 : i32
    return %c0_i32, %c0_i32_0 : i32, i32
  }
  func.func @transform_2(%arg0: i32) -> (i32, i32) {
    %c0_i32 = arith.constant 0 : i32
    %c0_i32_0 = arith.constant 0 : i32
    %c0_i32_1 = arith.constant 0 : i32
    return %c0_i32, %c0_i32_0 : i32, i32
  }
  func.func @transform_3(%arg0: i32) -> (i32, i32) {
    %c0_i32 = arith.constant 0 : i32
    %c0_i32_0 = arith.constant 0 : i32
    return %c0_i32, %arg0 : i32, i32
  }
}

module attributes {stable_mosaic.version = 11 : i64} {
  func.func @_conv_bn_stats_kernel(%arg0: i32, %arg1: memref<8x32xf32, #tpu.memory_space<vmem>>, %arg2: memref<8x1xf32, #tpu.memory_space<vmem>>, %arg3: memref<8x1xf32, #tpu.memory_space<vmem>>, %arg4: memref<8x24xf32, #tpu.memory_space<vmem>>, %arg5: memref<8x1xf32, #tpu.memory_space<vmem>>, %arg6: memref<8x32xf32, #tpu.memory_space<vmem>>, %arg7: memref<8x2xf32, #tpu.memory_space<vmem>>, %arg8: memref<8x1xf32, #tpu.memory_space<vmem>>, %arg9: memref<8x1xf32, #tpu.memory_space<vmem>>) attributes {dimension_semantics = [#tpu.dimension_semantics<arbitrary>], iteration_bounds = array<i64: 1>, scalar_prefetch = 0 : i64, scratch_operands = 2 : i64, tpu.core_type = #tpu.core_type<tc>, window_params = [{transform_indices = @transform_0, window_bounds = array<i64: 8, 32>}, {pipeline_mode = #tpu.pipeline_mode<synchronous>, transform_indices = @transform_1, window_bounds = array<i64: 8, 1>}, {pipeline_mode = #tpu.pipeline_mode<synchronous>, transform_indices = @transform_2, window_bounds = array<i64: 8, 1>}, {pipeline_mode = #tpu.pipeline_mode<synchronous>, transform_indices = @transform_3, window_bounds = array<i64: 8, 24>}, {pipeline_mode = #tpu.pipeline_mode<synchronous>, transform_indices = @transform_4, window_bounds = array<i64: 8, 1>}, {transform_indices = @transform_5, window_bounds = array<i64: 8, 32>}, {pipeline_mode = #tpu.pipeline_mode<synchronous>, transform_indices = @transform_6, window_bounds = array<i64: 8, 2>}]} {
    %c0_i32 = arith.constant 0 : i32
    %0 = arith.cmpi eq, %arg0, %c0_i32 : i32
    %1 = arith.extui %0 : i1 to i32
    %c0_i32_0 = arith.constant 0 : i32
    %2 = arith.cmpi ne, %1, %c0_i32_0 : i32
    scf.if %2 {
      %cst_38 = arith.constant 0.000000e+00 : f32
      %222 = vector.broadcast %cst_38 : f32 to vector<8x1xf32>
      %c0_39 = arith.constant 0 : index
      %c0_40 = arith.constant 0 : index
      %223 = vector.load %arg8[%c0_39, %c0_40] : memref<8x1xf32, #tpu.memory_space<vmem>>, vector<8x1xf32>
      tpu.vector_store %arg8[%c0_39, %c0_40], %222 {strides = array<i32>} : memref<8x1xf32, #tpu.memory_space<vmem>>, vector<8x1xf32>,
      %cst_41 = arith.constant 0.000000e+00 : f32
      %224 = vector.broadcast %cst_41 : f32 to vector<8x1xf32>
      %c0_42 = arith.constant 0 : index
      %c0_43 = arith.constant 0 : index
      %225 = vector.load %arg9[%c0_42, %c0_43] : memref<8x1xf32, #tpu.memory_space<vmem>>, vector<8x1xf32>
      tpu.vector_store %arg9[%c0_42, %c0_43], %224 {strides = array<i32>} : memref<8x1xf32, #tpu.memory_space<vmem>>, vector<8x1xf32>,
    } else {
    }
    %c0 = arith.constant 0 : index
    %c0_1 = arith.constant 0 : index
    %3 = vector.load %arg1[%c0, %c0_1] : memref<8x32xf32, #tpu.memory_space<vmem>>, vector<8x32xf32>
    %c0_2 = arith.constant 0 : index
    %c0_3 = arith.constant 0 : index
    %4 = vector.load %arg2[%c0_2, %c0_3] : memref<8x1xf32, #tpu.memory_space<vmem>>, vector<8x1xf32>
    %5 = vector.broadcast %4 : vector<8x1xf32> to vector<8x32xf32>
    %6 = arith.mulf %5, %3 : vector<8x32xf32>
    %c0_4 = arith.constant 0 : index
    %c0_5 = arith.constant 0 : index
    %7 = vector.load %arg3[%c0_4, %c0_5] : memref<8x1xf32, #tpu.memory_space<vmem>>, vector<8x1xf32>
    %8 = vector.broadcast %7 : vector<8x1xf32> to vector<8x32xf32>
    %9 = arith.addf %6, %8 : vector<8x32xf32>
    %cst = arith.constant 0.000000e+00 : f32
    %10 = vector.broadcast %cst : f32 to vector<8x32xf32>
    %11 = arith.maximumf %9, %10 : vector<8x32xf32>
    %c0_6 = arith.constant 0 : index
    %c0_7 = arith.constant 0 : index
    %12 = vector.load %arg4[%c0_6, %c0_7] : memref<8x24xf32, #tpu.memory_space<vmem>>, vector<8x24xf32>
    %c0_8 = arith.constant 0 : index
    %c0_9 = arith.constant 0 : index
    %13 = vector.load %arg5[%c0_8, %c0_9] : memref<8x1xf32, #tpu.memory_space<vmem>>, vector<8x1xf32>
    %14 = tpu.iota {dimensions = array<i32: 1>} : vector<1x32xi32>
    %c16_i32 = arith.constant 16 : i32
    %c0_i32_10 = arith.constant 0 : i32
    %15 = arith.cmpi eq, %c16_i32, %c0_i32_10 : i32
    %c1_i32 = arith.constant 1 : i32
    %16 = arith.select %15, %c1_i32, %c16_i32 : i32
    %17 = vector.broadcast %16 : i32 to vector<1x32xi32>
    %18 = arith.remsi %14, %17 : vector<1x32xi32>
    %c0_i32_11 = arith.constant 0 : i32
    %19 = vector.broadcast %c0_i32_11 : i32 to vector<1x32xi32>
    %20 = arith.cmpi ne, %18, %19 : vector<1x32xi32>
    %c0_i32_12 = arith.constant 0 : i32
    %21 = vector.broadcast %c0_i32_12 : i32 to vector<1x32xi32>
    %22 = arith.cmpi slt, %18, %21 : vector<1x32xi32>
    %c0_i32_13 = arith.constant 0 : i32
    %23 = arith.cmpi slt, %16, %c0_i32_13 : i32
    %24 = vector.broadcast %23 : i1 to vector<1x32xi1>
    %25 = vector.broadcast %24 : vector<1x32xi1> to vector<1x32xi1>
    %26 = arith.xori %22, %25 : vector<1x32xi1>
    %27 = arith.andi %26, %20 : vector<1x32xi1>
    %28 = vector.broadcast %16 : i32 to vector<1x32xi32>
    %29 = arith.addi %18, %28 : vector<1x32xi32>
    %30 = arith.select %27, %29, %18 : vector<1x32xi1>, vector<1x32xi32>
    %c0_i32_14 = arith.constant 0 : i32
    %31 = vector.broadcast %c0_i32_14 : i32 to vector<1x32xi32>
    %32 = arith.cmpi eq, %30, %31 : vector<1x32xi32>
    %c16_i32_15 = arith.constant 16 : i32
    %c0_i32_16 = arith.constant 0 : i32
    %33 = arith.cmpi eq, %c16_i32_15, %c0_i32_16 : i32
    %c1_i32_17 = arith.constant 1 : i32
    %34 = arith.select %33, %c1_i32_17, %c16_i32_15 : i32
    %35 = vector.broadcast %34 : i32 to vector<1x32xi32>
    %36 = arith.remsi %14, %35 : vector<1x32xi32>
    %c0_i32_18 = arith.constant 0 : i32
    %37 = vector.broadcast %c0_i32_18 : i32 to vector<1x32xi32>
    %38 = arith.cmpi ne, %36, %37 : vector<1x32xi32>
    %c0_i32_19 = arith.constant 0 : i32
    %39 = vector.broadcast %c0_i32_19 : i32 to vector<1x32xi32>
    %40 = arith.cmpi slt, %36, %39 : vector<1x32xi32>
    %c0_i32_20 = arith.constant 0 : i32
    %41 = arith.cmpi slt, %34, %c0_i32_20 : i32
    %42 = vector.broadcast %41 : i1 to vector<1x32xi1>
    %43 = vector.broadcast %42 : vector<1x32xi1> to vector<1x32xi1>
    %44 = arith.xori %40, %43 : vector<1x32xi1>
    %45 = arith.andi %44, %38 : vector<1x32xi1>
    %46 = vector.broadcast %34 : i32 to vector<1x32xi32>
    %47 = arith.addi %36, %46 : vector<1x32xi32>
    %48 = arith.select %45, %47, %36 : vector<1x32xi1>, vector<1x32xi32>
    %c15_i32 = arith.constant 15 : i32
    %49 = vector.broadcast %c15_i32 : i32 to vector<1x32xi32>
    %50 = arith.cmpi eq, %48, %49 : vector<1x32xi32>
    %c1_i32_21 = arith.constant 1 : i32
    %51 = tpu.dynamic_rotate %11 by %c1_i32_21 dim 1 : vector<8x32xf32>, i32 -> vector<8x32xf32>
    %cst_22 = arith.constant 0.000000e+00 : f32
    %52 = vector.shape_cast %32 : vector<1x32xi1> to vector<1x32xi1>
    %53 = vector.broadcast %52 : vector<1x32xi1> to vector<8x32xi1>
    %54 = vector.broadcast %cst_22 : f32 to vector<8x32xf32>
    %55 = arith.select %53, %54, %51 : vector<8x32xi1>, vector<8x32xf32>
    %c31_i32 = arith.constant 31 : i32
    %56 = tpu.dynamic_rotate %11 by %c31_i32 dim 1 : vector<8x32xf32>, i32 -> vector<8x32xf32>
    %cst_23 = arith.constant 0.000000e+00 : f32
    %57 = vector.shape_cast %50 : vector<1x32xi1> to vector<1x32xi1>
    %58 = vector.broadcast %57 : vector<1x32xi1> to vector<8x32xi1>
    %59 = vector.broadcast %cst_23 : f32 to vector<8x32xf32>
    %60 = arith.select %58, %59, %56 : vector<8x32xi1>, vector<8x32xf32>
    %61 = vector.shape_cast %13 : vector<8x1xf32> to vector<8x1xf32>
    %62 = vector.broadcast %61 : vector<8x1xf32> to vector<8x32xf32>
    %63 = vector.extract_strided_slice %12 {offsets = [0, 0], sizes = [8, 1], strides = [1, 1]} : vector<8x24xf32> to vector<8x1xf32>
    %64 = vector.extract_strided_slice %55 {offsets = [0, 0], sizes = [1, 32], strides = [1, 1]} : vector<8x32xf32> to vector<1x32xf32>
    %65 = vector.broadcast %63 : vector<8x1xf32> to vector<8x32xf32>
    %66 = vector.broadcast %64 : vector<1x32xf32> to vector<8x32xf32>
    %67 = arith.mulf %65, %66 : vector<8x32xf32>
    %68 = arith.addf %62, %67 : vector<8x32xf32>
    %69 = vector.extract_strided_slice %12 {offsets = [0, 1], sizes = [8, 1], strides = [1, 1]} : vector<8x24xf32> to vector<8x1xf32>
    %70 = vector.extract_strided_slice %55 {offsets = [1, 0], sizes = [1, 32], strides = [1, 1]} : vector<8x32xf32> to vector<1x32xf32>
    %71 = vector.broadcast %69 : vector<8x1xf32> to vector<8x32xf32>
    %72 = vector.broadcast %70 : vector<1x32xf32> to vector<8x32xf32>
    %73 = arith.mulf %71, %72 : vector<8x32xf32>
    %74 = arith.addf %68, %73 : vector<8x32xf32>
    %75 = vector.extract_strided_slice %12 {offsets = [0, 2], sizes = [8, 1], strides = [1, 1]} : vector<8x24xf32> to vector<8x1xf32>
    %76 = vector.extract_strided_slice %55 {offsets = [2, 0], sizes = [1, 32], strides = [1, 1]} : vector<8x32xf32> to vector<1x32xf32>
    %77 = vector.broadcast %75 : vector<8x1xf32> to vector<8x32xf32>
    %78 = vector.broadcast %76 : vector<1x32xf32> to vector<8x32xf32>
    %79 = arith.mulf %77, %78 : vector<8x32xf32>
    %80 = arith.addf %74, %79 : vector<8x32xf32>
    %81 = vector.extract_strided_slice %12 {offsets = [0, 3], sizes = [8, 1], strides = [1, 1]} : vector<8x24xf32> to vector<8x1xf32>
    %82 = vector.extract_strided_slice %55 {offsets = [3, 0], sizes = [1, 32], strides = [1, 1]} : vector<8x32xf32> to vector<1x32xf32>
    %83 = vector.broadcast %81 : vector<8x1xf32> to vector<8x32xf32>
    %84 = vector.broadcast %82 : vector<1x32xf32> to vector<8x32xf32>
    %85 = arith.mulf %83, %84 : vector<8x32xf32>
    %86 = arith.addf %80, %85 : vector<8x32xf32>
    %87 = vector.extract_strided_slice %12 {offsets = [0, 4], sizes = [8, 1], strides = [1, 1]} : vector<8x24xf32> to vector<8x1xf32>
    %88 = vector.extract_strided_slice %55 {offsets = [4, 0], sizes = [1, 32], strides = [1, 1]} : vector<8x32xf32> to vector<1x32xf32>
    %89 = vector.broadcast %87 : vector<8x1xf32> to vector<8x32xf32>
    %90 = vector.broadcast %88 : vector<1x32xf32> to vector<8x32xf32>
    %91 = arith.mulf %89, %90 : vector<8x32xf32>
    %92 = arith.addf %86, %91 : vector<8x32xf32>
    %93 = vector.extract_strided_slice %12 {offsets = [0, 5], sizes = [8, 1], strides = [1, 1]} : vector<8x24xf32> to vector<8x1xf32>
    %94 = vector.extract_strided_slice %55 {offsets = [5, 0], sizes = [1, 32], strides = [1, 1]} : vector<8x32xf32> to vector<1x32xf32>
    %95 = vector.broadcast %93 : vector<8x1xf32> to vector<8x32xf32>
    %96 = vector.broadcast %94 : vector<1x32xf32> to vector<8x32xf32>
    %97 = arith.mulf %95, %96 : vector<8x32xf32>
    %98 = arith.addf %92, %97 : vector<8x32xf32>
    %99 = vector.extract_strided_slice %12 {offsets = [0, 6], sizes = [8, 1], strides = [1, 1]} : vector<8x24xf32> to vector<8x1xf32>
    %100 = vector.extract_strided_slice %55 {offsets = [6, 0], sizes = [1, 32], strides = [1, 1]} : vector<8x32xf32> to vector<1x32xf32>
    %101 = vector.broadcast %99 : vector<8x1xf32> to vector<8x32xf32>
    %102 = vector.broadcast %100 : vector<1x32xf32> to vector<8x32xf32>
    %103 = arith.mulf %101, %102 : vector<8x32xf32>
    %104 = arith.addf %98, %103 : vector<8x32xf32>
    %105 = vector.extract_strided_slice %12 {offsets = [0, 7], sizes = [8, 1], strides = [1, 1]} : vector<8x24xf32> to vector<8x1xf32>
    %106 = vector.extract_strided_slice %55 {offsets = [7, 0], sizes = [1, 32], strides = [1, 1]} : vector<8x32xf32> to vector<1x32xf32>
    %107 = vector.broadcast %105 : vector<8x1xf32> to vector<8x32xf32>
    %108 = vector.broadcast %106 : vector<1x32xf32> to vector<8x32xf32>
    %109 = arith.mulf %107, %108 : vector<8x32xf32>
    %110 = arith.addf %104, %109 : vector<8x32xf32>
    %111 = vector.extract_strided_slice %12 {offsets = [0, 8], sizes = [8, 1], strides = [1, 1]} : vector<8x24xf32> to vector<8x1xf32>
    %112 = vector.extract_strided_slice %11 {offsets = [0, 0], sizes = [1, 32], strides = [1, 1]} : vector<8x32xf32> to vector<1x32xf32>
    %113 = vector.broadcast %111 : vector<8x1xf32> to vector<8x32xf32>
    %114 = vector.broadcast %112 : vector<1x32xf32> to vector<8x32xf32>
    %115 = arith.mulf %113, %114 : vector<8x32xf32>
    %116 = arith.addf %110, %115 : vector<8x32xf32>
    %117 = vector.extract_strided_slice %12 {offsets = [0, 9], sizes = [8, 1], strides = [1, 1]} : vector<8x24xf32> to vector<8x1xf32>
    %118 = vector.extract_strided_slice %11 {offsets = [1, 0], sizes = [1, 32], strides = [1, 1]} : vector<8x32xf32> to vector<1x32xf32>
    %119 = vector.broadcast %117 : vector<8x1xf32> to vector<8x32xf32>
    %120 = vector.broadcast %118 : vector<1x32xf32> to vector<8x32xf32>
    %121 = arith.mulf %119, %120 : vector<8x32xf32>
    %122 = arith.addf %116, %121 : vector<8x32xf32>
    %123 = vector.extract_strided_slice %12 {offsets = [0, 10], sizes = [8, 1], strides = [1, 1]} : vector<8x24xf32> to vector<8x1xf32>
    %124 = vector.extract_strided_slice %11 {offsets = [2, 0], sizes = [1, 32], strides = [1, 1]} : vector<8x32xf32> to vector<1x32xf32>
    %125 = vector.broadcast %123 : vector<8x1xf32> to vector<8x32xf32>
    %126 = vector.broadcast %124 : vector<1x32xf32> to vector<8x32xf32>
    %127 = arith.mulf %125, %126 : vector<8x32xf32>
    %128 = arith.addf %122, %127 : vector<8x32xf32>
    %129 = vector.extract_strided_slice %12 {offsets = [0, 11], sizes = [8, 1], strides = [1, 1]} : vector<8x24xf32> to vector<8x1xf32>
    %130 = vector.extract_strided_slice %11 {offsets = [3, 0], sizes = [1, 32], strides = [1, 1]} : vector<8x32xf32> to vector<1x32xf32>
    %131 = vector.broadcast %129 : vector<8x1xf32> to vector<8x32xf32>
    %132 = vector.broadcast %130 : vector<1x32xf32> to vector<8x32xf32>
    %133 = arith.mulf %131, %132 : vector<8x32xf32>
    %134 = arith.addf %128, %133 : vector<8x32xf32>
    %135 = vector.extract_strided_slice %12 {offsets = [0, 12], sizes = [8, 1], strides = [1, 1]} : vector<8x24xf32> to vector<8x1xf32>
    %136 = vector.extract_strided_slice %11 {offsets = [4, 0], sizes = [1, 32], strides = [1, 1]} : vector<8x32xf32> to vector<1x32xf32>
    %137 = vector.broadcast %135 : vector<8x1xf32> to vector<8x32xf32>
    %138 = vector.broadcast %136 : vector<1x32xf32> to vector<8x32xf32>
    %139 = arith.mulf %137, %138 : vector<8x32xf32>
    %140 = arith.addf %134, %139 : vector<8x32xf32>
    %141 = vector.extract_strided_slice %12 {offsets = [0, 13], sizes = [8, 1], strides = [1, 1]} : vector<8x24xf32> to vector<8x1xf32>
    %142 = vector.extract_strided_slice %11 {offsets = [5, 0], sizes = [1, 32], strides = [1, 1]} : vector<8x32xf32> to vector<1x32xf32>
    %143 = vector.broadcast %141 : vector<8x1xf32> to vector<8x32xf32>
    %144 = vector.broadcast %142 : vector<1x32xf32> to vector<8x32xf32>
    %145 = arith.mulf %143, %144 : vector<8x32xf32>
    %146 = arith.addf %140, %145 : vector<8x32xf32>
    %147 = vector.extract_strided_slice %12 {offsets = [0, 14], sizes = [8, 1], strides = [1, 1]} : vector<8x24xf32> to vector<8x1xf32>
    %148 = vector.extract_strided_slice %11 {offsets = [6, 0], sizes = [1, 32], strides = [1, 1]} : vector<8x32xf32> to vector<1x32xf32>
    %149 = vector.broadcast %147 : vector<8x1xf32> to vector<8x32xf32>
    %150 = vector.broadcast %148 : vector<1x32xf32> to vector<8x32xf32>
    %151 = arith.mulf %149, %150 : vector<8x32xf32>
    %152 = arith.addf %146, %151 : vector<8x32xf32>
    %153 = vector.extract_strided_slice %12 {offsets = [0, 15], sizes = [8, 1], strides = [1, 1]} : vector<8x24xf32> to vector<8x1xf32>
    %154 = vector.extract_strided_slice %11 {offsets = [7, 0], sizes = [1, 32], strides = [1, 1]} : vector<8x32xf32> to vector<1x32xf32>
    %155 = vector.broadcast %153 : vector<8x1xf32> to vector<8x32xf32>
    %156 = vector.broadcast %154 : vector<1x32xf32> to vector<8x32xf32>
    %157 = arith.mulf %155, %156 : vector<8x32xf32>
    %158 = arith.addf %152, %157 : vector<8x32xf32>
    %159 = vector.extract_strided_slice %12 {offsets = [0, 16], sizes = [8, 1], strides = [1, 1]} : vector<8x24xf32> to vector<8x1xf32>
    %160 = vector.extract_strided_slice %60 {offsets = [0, 0], sizes = [1, 32], strides = [1, 1]} : vector<8x32xf32> to vector<1x32xf32>
    %161 = vector.broadcast %159 : vector<8x1xf32> to vector<8x32xf32>
    %162 = vector.broadcast %160 : vector<1x32xf32> to vector<8x32xf32>
    %163 = arith.mulf %161, %162 : vector<8x32xf32>
    %164 = arith.addf %158, %163 : vector<8x32xf32>
    %165 = vector.extract_strided_slice %12 {offsets = [0, 17], sizes = [8, 1], strides = [1, 1]} : vector<8x24xf32> to vector<8x1xf32>
    %166 = vector.extract_strided_slice %60 {offsets = [1, 0], sizes = [1, 32], strides = [1, 1]} : vector<8x32xf32> to vector<1x32xf32>
    %167 = vector.broadcast %165 : vector<8x1xf32> to vector<8x32xf32>
    %168 = vector.broadcast %166 : vector<1x32xf32> to vector<8x32xf32>
    %169 = arith.mulf %167, %168 : vector<8x32xf32>
    %170 = arith.addf %164, %169 : vector<8x32xf32>
    %171 = vector.extract_strided_slice %12 {offsets = [0, 18], sizes = [8, 1], strides = [1, 1]} : vector<8x24xf32> to vector<8x1xf32>
    %172 = vector.extract_strided_slice %60 {offsets = [2, 0], sizes = [1, 32], strides = [1, 1]} : vector<8x32xf32> to vector<1x32xf32>
    %173 = vector.broadcast %171 : vector<8x1xf32> to vector<8x32xf32>
    %174 = vector.broadcast %172 : vector<1x32xf32> to vector<8x32xf32>
    %175 = arith.mulf %173, %174 : vector<8x32xf32>
    %176 = arith.addf %170, %175 : vector<8x32xf32>
    %177 = vector.extract_strided_slice %12 {offsets = [0, 19], sizes = [8, 1], strides = [1, 1]} : vector<8x24xf32> to vector<8x1xf32>
    %178 = vector.extract_strided_slice %60 {offsets = [3, 0], sizes = [1, 32], strides = [1, 1]} : vector<8x32xf32> to vector<1x32xf32>
    %179 = vector.broadcast %177 : vector<8x1xf32> to vector<8x32xf32>
    %180 = vector.broadcast %178 : vector<1x32xf32> to vector<8x32xf32>
    %181 = arith.mulf %179, %180 : vector<8x32xf32>
    %182 = arith.addf %176, %181 : vector<8x32xf32>
    %183 = vector.extract_strided_slice %12 {offsets = [0, 20], sizes = [8, 1], strides = [1, 1]} : vector<8x24xf32> to vector<8x1xf32>
    %184 = vector.extract_strided_slice %60 {offsets = [4, 0], sizes = [1, 32], strides = [1, 1]} : vector<8x32xf32> to vector<1x32xf32>
    %185 = vector.broadcast %183 : vector<8x1xf32> to vector<8x32xf32>
    %186 = vector.broadcast %184 : vector<1x32xf32> to vector<8x32xf32>
    %187 = arith.mulf %185, %186 : vector<8x32xf32>
    %188 = arith.addf %182, %187 : vector<8x32xf32>
    %189 = vector.extract_strided_slice %12 {offsets = [0, 21], sizes = [8, 1], strides = [1, 1]} : vector<8x24xf32> to vector<8x1xf32>
    %190 = vector.extract_strided_slice %60 {offsets = [5, 0], sizes = [1, 32], strides = [1, 1]} : vector<8x32xf32> to vector<1x32xf32>
    %191 = vector.broadcast %189 : vector<8x1xf32> to vector<8x32xf32>
    %192 = vector.broadcast %190 : vector<1x32xf32> to vector<8x32xf32>
    %193 = arith.mulf %191, %192 : vector<8x32xf32>
    %194 = arith.addf %188, %193 : vector<8x32xf32>
    %195 = vector.extract_strided_slice %12 {offsets = [0, 22], sizes = [8, 1], strides = [1, 1]} : vector<8x24xf32> to vector<8x1xf32>
    %196 = vector.extract_strided_slice %60 {offsets = [6, 0], sizes = [1, 32], strides = [1, 1]} : vector<8x32xf32> to vector<1x32xf32>
    %197 = vector.broadcast %195 : vector<8x1xf32> to vector<8x32xf32>
    %198 = vector.broadcast %196 : vector<1x32xf32> to vector<8x32xf32>
    %199 = arith.mulf %197, %198 : vector<8x32xf32>
    %200 = arith.addf %194, %199 : vector<8x32xf32>
    %201 = vector.extract_strided_slice %12 {offsets = [0, 23], sizes = [8, 1], strides = [1, 1]} : vector<8x24xf32> to vector<8x1xf32>
    %202 = vector.extract_strided_slice %60 {offsets = [7, 0], sizes = [1, 32], strides = [1, 1]} : vector<8x32xf32> to vector<1x32xf32>
    %203 = vector.broadcast %201 : vector<8x1xf32> to vector<8x32xf32>
    %204 = vector.broadcast %202 : vector<1x32xf32> to vector<8x32xf32>
    %205 = arith.mulf %203, %204 : vector<8x32xf32>
    %206 = arith.addf %200, %205 : vector<8x32xf32>
    %c0_24 = arith.constant 0 : index
    %c0_25 = arith.constant 0 : index
    %207 = vector.load %arg6[%c0_24, %c0_25] : memref<8x32xf32, #tpu.memory_space<vmem>>, vector<8x32xf32>
    tpu.vector_store %arg6[%c0_24, %c0_25], %206 {strides = array<i32>} : memref<8x32xf32, #tpu.memory_space<vmem>>, vector<8x32xf32>,
    %c0_26 = arith.constant 0 : index
    %c0_27 = arith.constant 0 : index
    %208 = vector.load %arg8[%c0_26, %c0_27] : memref<8x1xf32, #tpu.memory_space<vmem>>, vector<8x1xf32>
    %cst_28 = arith.constant dense<0.000000e+00> : vector<8xf32>
    %209 = vector.multi_reduction <add>, %206, %cst_28 [1] : vector<8x32xf32> to vector<8xf32>
    %210 = vector.shape_cast %209 : vector<8xf32> to vector<8x1xf32>
    %211 = arith.addf %208, %210 : vector<8x1xf32>
    %c0_29 = arith.constant 0 : index
    %c0_30 = arith.constant 0 : index
    %212 = vector.load %arg8[%c0_29, %c0_30] : memref<8x1xf32, #tpu.memory_space<vmem>>, vector<8x1xf32>
    tpu.vector_store %arg8[%c0_29, %c0_30], %211 {strides = array<i32>} : memref<8x1xf32, #tpu.memory_space<vmem>>, vector<8x1xf32>,
    %c0_31 = arith.constant 0 : index
    %c0_32 = arith.constant 0 : index
    %213 = vector.load %arg9[%c0_31, %c0_32] : memref<8x1xf32, #tpu.memory_space<vmem>>, vector<8x1xf32>
    %214 = arith.mulf %206, %206 : vector<8x32xf32>
    %cst_33 = arith.constant dense<0.000000e+00> : vector<8xf32>
    %215 = vector.multi_reduction <add>, %214, %cst_33 [1] : vector<8x32xf32> to vector<8xf32>
    %216 = vector.shape_cast %215 : vector<8xf32> to vector<8x1xf32>
    %217 = arith.addf %213, %216 : vector<8x1xf32>
    %c0_34 = arith.constant 0 : index
    %c0_35 = arith.constant 0 : index
    %218 = vector.load %arg9[%c0_34, %c0_35] : memref<8x1xf32, #tpu.memory_space<vmem>>, vector<8x1xf32>
    tpu.vector_store %arg9[%c0_34, %c0_35], %217 {strides = array<i32>} : memref<8x1xf32, #tpu.memory_space<vmem>>, vector<8x1xf32>,
    %c0_i32_36 = arith.constant 0 : i32
    %219 = arith.cmpi eq, %arg0, %c0_i32_36 : i32
    %220 = arith.extui %219 : i1 to i32
    %c0_i32_37 = arith.constant 0 : i32
    %221 = arith.cmpi ne, %220, %c0_i32_37 : i32
    scf.if %221 {
      %c0_38 = arith.constant 0 : index
      %c0_39 = arith.constant 0 : index
      %222 = vector.load %arg8[%c0_38, %c0_39] : memref<8x1xf32, #tpu.memory_space<vmem>>, vector<8x1xf32>
      %c0_40 = arith.constant 0 : index
      %c0_41 = arith.constant 0 : index
      %223 = vector.load %arg9[%c0_40, %c0_41] : memref<8x1xf32, #tpu.memory_space<vmem>>, vector<8x1xf32>
      %224 = tpu.concatenate %222, %223 in 1 : vector<8x1xf32>, vector<8x1xf32> -> vector<8x2xf32>
      %c0_42 = arith.constant 0 : index
      %c0_43 = arith.constant 0 : index
      %225 = vector.load %arg7[%c0_42, %c0_43] : memref<8x2xf32, #tpu.memory_space<vmem>>, vector<8x2xf32>
      tpu.vector_store %arg7[%c0_42, %c0_43], %224 {strides = array<i32>} : memref<8x2xf32, #tpu.memory_space<vmem>>, vector<8x2xf32>,
    } else {
    }
    return
  }
  func.func @transform_0(%arg0: i32) -> (i32, i32) {
    %c0_i32 = arith.constant 0 : i32
    %c0_i32_0 = arith.constant 0 : i32
    return %c0_i32, %arg0 : i32, i32
  }
  func.func @transform_1(%arg0: i32) -> (i32, i32) {
    %c0_i32 = arith.constant 0 : i32
    %c0_i32_0 = arith.constant 0 : i32
    %c0_i32_1 = arith.constant 0 : i32
    return %c0_i32, %c0_i32_0 : i32, i32
  }
  func.func @transform_2(%arg0: i32) -> (i32, i32) {
    %c0_i32 = arith.constant 0 : i32
    %c0_i32_0 = arith.constant 0 : i32
    %c0_i32_1 = arith.constant 0 : i32
    return %c0_i32, %c0_i32_0 : i32, i32
  }
  func.func @transform_3(%arg0: i32) -> (i32, i32) {
    %c0_i32 = arith.constant 0 : i32
    %c0_i32_0 = arith.constant 0 : i32
    %c0_i32_1 = arith.constant 0 : i32
    return %c0_i32, %c0_i32_0 : i32, i32
  }
  func.func @transform_4(%arg0: i32) -> (i32, i32) {
    %c0_i32 = arith.constant 0 : i32
    %c0_i32_0 = arith.constant 0 : i32
    %c0_i32_1 = arith.constant 0 : i32
    return %c0_i32, %c0_i32_0 : i32, i32
  }
  func.func @transform_5(%arg0: i32) -> (i32, i32) {
    %c0_i32 = arith.constant 0 : i32
    %c0_i32_0 = arith.constant 0 : i32
    return %c0_i32, %arg0 : i32, i32
  }
  func.func @transform_6(%arg0: i32) -> (i32, i32) {
    %c0_i32 = arith.constant 0 : i32
    %c0_i32_0 = arith.constant 0 : i32
    %c0_i32_1 = arith.constant 0 : i32
    return %c0_i32, %c0_i32_0 : i32, i32
  }
}

</mosaic_0001>

<llo_original>
// kernel: conv_block_1d.5
$region0: #{conv_block_1d.5}
  #allocation0 [shape = 'u32[]', space=smem, size = 0x4, offset = 0x4, fixed_abs, tag = 'smem constant byte address 0x4 - core index']
  #allocation1 [shape = 'u32[144,128]{1,0:T(1,128)}', space=vmem, size = 0x12000, scoped, tag = 'internal scratch']
  %s0 = inlined_call_operand.vmem [shape: f32[8,32], index: 0, kind: input, shape index: {}]
  %s1 = inlined_call_operand.vmem [shape: f32[8,1], index: 1, kind: input, shape index: {}]
  %s2 = inlined_call_operand.vmem [shape: f32[8,1], index: 2, kind: input, shape index: {}]
  %s3 = inlined_call_operand.vmem [shape: f32[8,32], index: 3, kind: output, shape index: {}]
  %s4 = sld [smem:[#allocation0]]
  $region22: #{conv_block_1d.5} parent=0
    _
  %s6 = ssub.s32 1, %s4
  %s7 = scalar_select 0, %s6, %s4
  // Predicated region
  $region2: #{conv_block_1d.5} parent=0 // pred_check
    _
  $region3: #{conv_block_1d.5} parent=0 // pred_check_branch
    %9 = sbr.rel (0) target = $region5
  $region4: #{conv_block_1d.5} parent=0 // pred_region
    _
  $region5: #{conv_block_1d.5} parent=0 // pred_fallthru
    _
  // Predicated region
  $region6: #{conv_block_1d.5} parent=0 // pred_check
    _
  $region7: #{conv_block_1d.5} parent=0 // pred_check_branch
    %11 = sbr.rel (0) target = $region9
  $region8: #{conv_block_1d.5} parent=0 // pred_region
    _
  $region9: #{conv_block_1d.5} parent=0 // pred_fallthru
    _
  // Predicated region
  $region10: #{conv_block_1d.5} parent=0 // pred_check
    _
  $region11: #{conv_block_1d.5} parent=0 // pred_check_branch
    %13 = sbr.rel (0) target = $region13
  $region12: #{conv_block_1d.5} parent=0 // pred_region
    _
  $region13: #{conv_block_1d.5} parent=0 // pred_fallthru
    _
  %v14 = vld [vmem:[%s1] sm:$0xff]
  %v15 = vld [vmem:[%s0] sm:$0xff]
  %17 = vset.pattern.permute.xlu0 0
  %18 = vperm.xlu0 %17, %v14
  %v19 = vpop.permute.xlu0 %18
  %v21 = vmul.f32 %v19, %v15
  %v22 = vld [vmem:[%s2] sm:$0xff]
  %24 = vset.pattern.permute.xlu0 0
  %25 = vperm.xlu0 %24, %v22
  %v26 = vpop.permute.xlu0 %25
  %v28 = vadd.f32 %v21, %v26
  %v29 = vmax.f32 %v28, 0.0
  %vm30 = vcmask 261120
  %31 = vst.msk [vmem:[%s3] sm:$0xff] %vm30, %v29
  // Predicated region
  $region14: #{conv_block_1d.5} parent=0 // pred_check
    _
  $region15: #{conv_block_1d.5} parent=0 // pred_check_branch
    %33 = sbr.rel (0) target = $region17
  $region16: #{conv_block_1d.5} parent=0 // pred_region
    _
  $region17: #{conv_block_1d.5} parent=0 // pred_fallthru
    _
  // Predicated region
  $region18: #{conv_block_1d.5} parent=0 // pred_check
    _
  $region19: #{conv_block_1d.5} parent=0 // pred_check_branch
    %35 = sbr.rel (0) target = $region21
  $region20: #{conv_block_1d.5} parent=0 // pred_region
    _
  $region21: #{conv_block_1d.5} parent=0 // pred_fallthru
    _

// kernel: conv_block_1d.3
$region0: #{conv_block_1d.3}
  #allocation0 [shape = 'u32[]', space=smem, size = 0x4, offset = 0x4, fixed_abs, tag = 'smem constant byte address 0x4 - core index']
  #allocation1 [shape = 'u32[144,128]{1,0:T(1,128)}', space=vmem, size = 0x12000, scoped, tag = 'internal scratch']
  #allocation2 [shape = 'f32[8,1]{1,0:T(8,128)}', space=vmem, size = 0x1000, scoped, tag = 'scratch operand']
  #allocation3 [shape = 'f32[8,1]{1,0:T(8,128)}', space=vmem, size = 0x1000, scoped, tag = 'scratch operand']
  %s0 = inlined_call_operand.vmem [shape: f32[4,32], index: 0, kind: input, shape index: {}]
  %s1 = inlined_call_operand.vmem [shape: f32[8,12], index: 1, kind: input, shape index: {}]
  %s2 = inlined_call_operand.vmem [shape: f32[8,1], index: 2, kind: input, shape index: {}]
  %s3 = inlined_call_operand.vmem [shape: f32[8,32], index: 3, kind: output, shape index: {0}]
  %s4 = inlined_call_operand.vmem [shape: f32[8,2], index: 4, kind: output, shape index: {1}]
  %5 = xla_tuple %s3, %s4
  %s6 = sld [smem:[#allocation0]]
  $region38: #{conv_block_1d.3} parent=0
    _
  %s8 = ssub.s32 1, %s6
  %s9 = scalar_select 0, %s8, %s6
  // Predicated region
  $region2: #{conv_block_1d.3} parent=0 // pred_check
    _
  $region3: #{conv_block_1d.3} parent=0 // pred_check_branch
    %11 = sbr.rel (0) target = $region5
  $region4: #{conv_block_1d.3} parent=0 // pred_region
    _
  $region5: #{conv_block_1d.3} parent=0 // pred_fallthru
    _
  // Predicated region
  $region6: #{conv_block_1d.3} parent=0 // pred_check
    _
  $region7: #{conv_block_1d.3} parent=0 // pred_check_branch
    %13 = sbr.rel (0) target = $region9
  $region8: #{conv_block_1d.3} parent=0 // pred_region
    _
  $region9: #{conv_block_1d.3} parent=0 // pred_fallthru
    _
  // Predicated region
  $region10: #{conv_block_1d.3} parent=0 // pred_check
    _
  $region11: #{conv_block_1d.3} parent=0 // pred_check_branch
    %15 = sbr.rel (0) target = $region13
  $region12: #{conv_block_1d.3} parent=0 // pred_region
    _
  $region13: #{conv_block_1d.3} parent=0 // pred_fallthru
    _
  %p16 = scmp.eq.s32.totalorder 0, 0
  // Predicated region
  $region14: #{conv_block_1d.3} parent=0 // pred_check
    %p17 = pneg %p16
  $region15: #{conv_block_1d.3} parent=0 // pred_check_branch
    %19 = sbr.rel (%p17) target = $region17
  $region16: #{conv_block_1d.3} parent=0 // pred_region
    %vm20 = vcmask 7168
    %21 = vst.msk [vmem:[#allocation2] sm:$0xff] %vm20, 0.0
    %22 = vst.msk [vmem:[#allocation3] sm:$0xff] %vm20, 0.0
  $region17: #{conv_block_1d.3} parent=0 // pred_fallthru
    _
  %v23 = vld [vmem:[%s0] sm:$0xf]
  %v24 = vld [vmem:[%s1] sm:$0xff]
  %v25 = vld [vmem:[%s2] sm:$0xff]
  %v26 = vlaneseq
  %v27 = vand.u32 %v26, 127
  %vm28 = vcmp.lt.s32.totalorder %v27, 0
  %v29 = vsub.s32 0, %v27
  %v30 = vsel %vm28, %v29, %v27
  %v31 = vshrl.u32 %v30, 4
  %v32 = vand.u32 %v30, 15
  %v33 = vsub.s32 0, %v32
  %v34 = vsel %vm28, %v33, %v32
  %vm35 = vcmp.ne.s32.totalorder %v34, 0
  %vm36 = vcmp.lt.s32.totalorder %v34, 0
  %vm37 = vmand %vm36, %vm35
  %v38 = vadd.s32 %v34, 16
  %v39 = vsel %vm37, %v38, %v34
  %vm40 = vcmp.eq.s32.totalorder %v39, 0
  %vm41 = vcmp.eq.s32.totalorder %v39, 15
  %vm42 = vcmask 1047808
  %43 = vrot.lane.b32.xlu0 %v23, 32
  %v44 = vpop.permute.xlu0 %43
  %v45 = vsel %vm42, %v44, %v23
  %46 = vrot.lane.b32.xlu0 %v45, 32
  %v47 = vpop.permute.xlu0 %46
  %v48 = vsel %vm42, %v47, %v23
  %v49 = vsel %vm40, 1, 0
  %vm50 = vcmp.eq.s32.totalorder %v49, 1
  %52 = vrot.lane.b32.xlu0 %v48, 97
  %v53 = vpop.permute.xlu0 %52
  %v55 = vsel %vm50, 0.0, %v53
  %v56 = vsel %vm41, 1, 0
  %vm57 = vcmp.eq.s32.totalorder %v56, 1
  %58 = vrot.lane.b32.xlu0 %v48, 127
  %v59 = vpop.permute.xlu0 %58
  %v61 = vsel %vm57, 0.0, %v59
  %63 = vset.pattern.permute.xlu0 0
  %64 = vperm.xlu0 %63, %v25
  %v65 = vpop.permute.xlu0 %64
  %68 = vset.pattern.permute.xlu0 0
  %69 = vperm.xlu0 %68, %v24
  %v70 = vpop.permute.xlu0 %69
  %v72 = vlaneseq
  %v73 = vshrl.u32 %v72, 7
  %v74 = vsub.s32 0, %v73
  %v75 = vrot.slane %v55, %v74
  %v76 = vmul.f32 %v70, %v75
  %v77 = vadd.f32 %v65, %v76
  %78 = vset.pattern.permute.xlu0 1
  %79 = vperm.xlu0 %78, %v24
  %v80 = vpop.permute.xlu0 %79
  %v82 = vlaneseq
  %v83 = vshrl.u32 %v82, 7
  %v84 = vsub.s32 1, %v83
  %v85 = vrot.slane %v55, %v84
  %v86 = vmul.f32 %v80, %v85
  %v87 = vadd.f32 %v77, %v86
  %88 = vset.pattern.permute.xlu0 2
  %89 = vperm.xlu0 %88, %v24
  %v90 = vpop.permute.xlu0 %89
  %v92 = vlaneseq
  %v93 = vshrl.u32 %v92, 7
  %v94 = vsub.s32 2, %v93
  %v95 = vrot.slane %v55, %v94
  %v96 = vmul.f32 %v90, %v95
  %v97 = vadd.f32 %v87, %v96
  %98 = vset.pattern.permute.xlu0 3
  %99 = vperm.xlu0 %98, %v24
  %v100 = vpop.permute.xlu0 %99
  %v102 = vlaneseq
  %v103 = vshrl.u32 %v102, 7
  %v104 = vsub.s32 3, %v103
  %v105 = vrot.slane %v55, %v104
  %v106 = vmul.f32 %v100, %v105
  %v107 = vadd.f32 %v97, %v106
  %108 = vset.pattern.permute.xlu0 4
  %109 = vperm.xlu0 %108, %v24
  %v110 = vpop.permute.xlu0 %109
  %v112 = vlaneseq
  %v113 = vshrl.u32 %v112, 7
  %v114 = vsub.s32 0, %v113
  %v115 = vrot.slane %v23, %v114
  %v116 = vmul.f32 %v110, %v115
  %v117 = vadd.f32 %v107, %v116
  %118 = vset.pattern.permute.xlu0 5
  %119 = vperm.xlu0 %118, %v24
  %v120 = vpop.permute.xlu0 %119
  %v122 = vlaneseq
  %v123 = vshrl.u32 %v122, 7
  %v124 = vsub.s32 1, %v123
  %v125 = vrot.slane %v23, %v124
  %v126 = vmul.f32 %v120, %v125
  %v127 = vadd.f32 %v117, %v126
  %128 = vset.pattern.permute.xlu0 6
  %129 = vperm.xlu0 %128, %v24
  %v130 = vpop.permute.xlu0 %129
  %v132 = vlaneseq
  %v133 = vshrl.u32 %v132, 7
  %v134 = vsub.s32 2, %v133
  %v135 = vrot.slane %v23, %v134
  %v136 = vmul.f32 %v130, %v135
  %v137 = vadd.f32 %v127, %v136
  %138 = vset.pattern.permute.xlu0 7
  %139 = vperm.xlu0 %138, %v24
  %v140 = vpop.permute.xlu0 %139
  %v142 = vlaneseq
  %v143 = vshrl.u32 %v142, 7
  %v144 = vsub.s32 3, %v143
  %v145 = vrot.slane %v23, %v144
  %v146 = vmul.f32 %v140, %v145
  %v147 = vadd.f32 %v137, %v146
  %148 = vset.pattern.permute.xlu0 8
  %149 = vperm.xlu0 %148, %v24
  %v150 = vpop.permute.xlu0 %149
  %v152 = vlaneseq
  %v153 = vshrl.u32 %v152, 7
  %v154 = vsub.s32 0, %v153
  %v155 = vrot.slane %v61, %v154
  %v156 = vmul.f32 %v150, %v155
  %v157 = vadd.f32 %v147, %v156
  %158 = vset.pattern.permute.xlu0 9
  %159 = vperm.xlu0 %158, %v24
  %v160 = vpop.permute.xlu0 %159
  %v162 = vlaneseq
  %v163 = vshrl.u32 %v162, 7
  %v164 = vsub.s32 1, %v163
  %v165 = vrot.slane %v61, %v164
  %v166 = vmul.f32 %v160, %v165
  %v167 = vadd.f32 %v157, %v166
  %168 = vset.pattern.permute.xlu0 10
  %169 = vperm.xlu0 %168, %v24
  %v170 = vpop.permute.xlu0 %169
  %v172 = vlaneseq
  %v173 = vshrl.u32 %v172, 7
  %v174 = vsub.s32 2, %v173
  %v175 = vrot.slane %v61, %v174
  %v176 = vmul.f32 %v170, %v175
  %v177 = vadd.f32 %v167, %v176
  %178 = vset.pattern.permute.xlu0 11
  %179 = vperm.xlu0 %178, %v24
  %v180 = vpop.permute.xlu0 %179
  %v182 = vlaneseq
  %v183 = vshrl.u32 %v182, 7
  %v184 = vsub.s32 3, %v183
  %v185 = vrot.slane %v61, %v184
  %v186 = vmul.f32 %v180, %v185
  %v187 = vadd.f32 %v177, %v186
  %vm188 = vcmask 261120
  %189 = vst.msk [vmem:[%s3] sm:$0xff] %vm188, %v187
  %v190 = vld [vmem:[#allocation2] sm:$0xff]
  %v191 = vsel %vm188, %v187, 0.0
  %192 = vadd.xlane.f32.xlu0 %v191
  %v193 = vpop.xlane.xlu0 %192
  %v194 = vadd.f32 %v190, %v193
  %vm195 = vcmask 7168
  %196 = vst.msk [vmem:[#allocation2] sm:$0xff] %vm195, %v194
  %v197 = vld [vmem:[#allocation3] sm:$0xff]
  %v198 = vmul.f32 %v187, %v187
  %v199 = vsel %vm188, %v198, 0.0
  %200 = vadd.xlane.f32.xlu0 %v199
  %v201 = vpop.xlane.xlu0 %200
  %v202 = vadd.f32 %v197, %v201
  %203 = vst.msk [vmem:[#allocation3] sm:$0xff] %vm195, %v202
  // Predicated region
  $region18: #{conv_block_1d.3} parent=0 // pred_check
    %p204 = pneg %p16
  $region19: #{conv_block_1d.3} parent=0 // pred_check_branch
    %206 = sbr.rel (%p204) target = $region21
  $region20: #{conv_block_1d.3} parent=0 // pred_region
    %v207 = vld [vmem:[#allocation2] sm:$0xff]
    %v208 = vld [vmem:[#allocation3] sm:$0xff]
    %210 = vrot.lane.b32.xlu0 %v208, 1
    %v211 = vpop.permute.xlu0 %210
    %v213 = vsel %vm195, %v207, %v211
    %vm214 = vcmask 15360
    %215 = vst.msk [vmem:[%s4] sm:$0xff] %vm214, %v213
  $region21: #{conv_block_1d.3} parent=0 // pred_fallthru
    _
  // Predicated region
  $region22: #{conv_block_1d.3} parent=0 // pred_check
    _
  $region23: #{conv_block_1d.3} parent=0 // pred_check_branch
    %217 = sbr.rel (0) target = $region25
  $region24: #{conv_block_1d.3} parent=0 // pred_region
    _
  $region25: #{conv_block_1d.3} parent=0 // pred_fallthru
    _
  // Predicated region
  $region26: #{conv_block_1d.3} parent=0 // pred_check
    _
  $region27: #{conv_block_1d.3} parent=0 // pred_check_branch
    %219 = sbr.rel (0) target = $region29
  $region28: #{conv_block_1d.3} parent=0 // pred_region
    _
  $region29: #{conv_block_1d.3} parent=0 // pred_fallthru
    _
  // Predicated region
  $region30: #{conv_block_1d.3} parent=0 // pred_check
    _
  $region31: #{conv_block_1d.3} parent=0 // pred_check_branch
    %221 = sbr.rel (0) target = $region33
  $region32: #{conv_block_1d.3} parent=0 // pred_region
    _
  $region33: #{conv_block_1d.3} parent=0 // pred_fallthru
    _
  // Predicated region
  $region34: #{conv_block_1d.3} parent=0 // pred_check
    _
  $region35: #{conv_block_1d.3} parent=0 // pred_check_branch
    %223 = sbr.rel (0) target = $region37
  $region36: #{conv_block_1d.3} parent=0 // pred_region
    _
  $region37: #{conv_block_1d.3} parent=0 // pred_fallthru
    _

// kernel: conv_block_1d.4
$region0: #{conv_block_1d.4}
  #allocation0 [shape = 'u32[]', space=smem, size = 0x4, offset = 0x4, fixed_abs, tag = 'smem constant byte address 0x4 - core index']
  #allocation1 [shape = 'u32[144,128]{1,0:T(1,128)}', space=vmem, size = 0x12000, scoped, tag = 'internal scratch']
  #allocation2 [shape = 'f32[8,1]{1,0:T(8,128)}', space=vmem, size = 0x1000, scoped, tag = 'scratch operand']
  #allocation3 [shape = 'f32[8,1]{1,0:T(8,128)}', space=vmem, size = 0x1000, scoped, tag = 'scratch operand']
  %s0 = inlined_call_operand.vmem [shape: f32[8,32], index: 0, kind: input, shape index: {}]
  %s1 = inlined_call_operand.vmem [shape: f32[8,1], index: 1, kind: input, shape index: {}]
  %s2 = inlined_call_operand.vmem [shape: f32[8,1], index: 2, kind: input, shape index: {}]
  %s3 = inlined_call_operand.vmem [shape: f32[8,24], index: 3, kind: input, shape index: {}]
  %s4 = inlined_call_operand.vmem [shape: f32[8,1], index: 4, kind: input, shape index: {}]
  %s5 = inlined_call_operand.vmem [shape: f32[8,32], index: 5, kind: output, shape index: {0}]
  %s6 = inlined_call_operand.vmem [shape: f32[8,2], index: 6, kind: output, shape index: {1}]
  %7 = xla_tuple %s5, %s6
  %s8 = sld [smem:[#allocation0]]
  $region46: #{conv_block_1d.4} parent=0
    _
  %s10 = ssub.s32 1, %s8
  %s11 = scalar_select 0, %s10, %s8
  // Predicated region
  $region2: #{conv_block_1d.4} parent=0 // pred_check
    _
  $region3: #{conv_block_1d.4} parent=0 // pred_check_branch
    %13 = sbr.rel (0) target = $region5
  $region4: #{conv_block_1d.4} parent=0 // pred_region
    _
  $region5: #{conv_block_1d.4} parent=0 // pred_fallthru
    _
  // Predicated region
  $region6: #{conv_block_1d.4} parent=0 // pred_check
    _
  $region7: #{conv_block_1d.4} parent=0 // pred_check_branch
    %15 = sbr.rel (0) target = $region9
  $region8: #{conv_block_1d.4} parent=0 // pred_region
    _
  $region9: #{conv_block_1d.4} parent=0 // pred_fallthru
    _
  // Predicated region
  $region10: #{conv_block_1d.4} parent=0 // pred_check
    _
  $region11: #{conv_block_1d.4} parent=0 // pred_check_branch
    %17 = sbr.rel (0) target = $region13
  $region12: #{conv_block_1d.4} parent=0 // pred_region
    _
  $region13: #{conv_block_1d.4} parent=0 // pred_fallthru
    _
  // Predicated region
  $region14: #{conv_block_1d.4} parent=0 // pred_check
    _
  $region15: #{conv_block_1d.4} parent=0 // pred_check_branch
    %19 = sbr.rel (0) target = $region17
  $region16: #{conv_block_1d.4} parent=0 // pred_region
    _
  $region17: #{conv_block_1d.4} parent=0 // pred_fallthru
    _
  // Predicated region
  $region18: #{conv_block_1d.4} parent=0 // pred_check
    _
  $region19: #{conv_block_1d.4} parent=0 // pred_check_branch
    %21 = sbr.rel (0) target = $region21
  $region20: #{conv_block_1d.4} parent=0 // pred_region
    _
  $region21: #{conv_block_1d.4} parent=0 // pred_fallthru
    _
  %p22 = scmp.eq.s32.totalorder 0, 0
  // Predicated region
  $region22: #{conv_block_1d.4} parent=0 // pred_check
    %p23 = pneg %p22
  $region23: #{conv_block_1d.4} parent=0 // pred_check_branch
    %25 = sbr.rel (%p23) target = $region25
  $region24: #{conv_block_1d.4} parent=0 // pred_region
    %vm26 = vcmask 7168
    %27 = vst.msk [vmem:[#allocation2] sm:$0xff] %vm26, 0.0
    %28 = vst.msk [vmem:[#allocation3] sm:$0xff] %vm26, 0.0
  $region25: #{conv_block_1d.4} parent=0 // pred_fallthru
    _
  %v29 = vld [vmem:[%s0] sm:$0xff]
  %v30 = vld [vmem:[%s1] sm:$0xff]
  %32 = vset.pattern.permute.xlu0 0
  %33 = vperm.xlu0 %32, %v30
  %v34 = vpop.permute.xlu0 %33
  %v36 = vmul.f32 %v34, %v29
  %v37 = vld [vmem:[%s2] sm:$0xff]
  %39 = vset.pattern.permute.xlu0 0
  %40 = vperm.xlu0 %39, %v37
  %v41 = vpop.permute.xlu0 %40
  %v43 = vadd.f32 %v36, %v41
  %v44 = vmax.f32 %v43, 0.0
  %v45 = vld [vmem:[%s3] sm:$0xff]
  %v46 = vld [vmem:[%s4] sm:$0xff]
  %v47 = vlaneseq
  %v48 = vand.u32 %v47, 127
  %vm49 = vcmp.lt.s32.totalorder %v48, 0
  %v50 = vsub.s32 0, %v48
  %v51 = vsel %vm49, %v50, %v48
  %v52 = vshrl.u32 %v51, 4
  %v53 = vand.u32 %v51, 15
  %v54 = vsub.s32 0, %v53
  %v55 = vsel %vm49, %v54, %v53
  %vm56 = vcmp.ne.s32.totalorder %v55, 0
  %vm57 = vcmp.lt.s32.totalorder %v55, 0
  %vm58 = vmand %vm57, %vm56
  %v59 = vadd.s32 %v55, 16
  %v60 = vsel %vm58, %v59, %v55
  %vm61 = vcmp.eq.s32.totalorder %v60, 0
  %vm62 = vcmp.eq.s32.totalorder %v60, 15
  %vm63 = vcmask 1047808
  %64 = vrot.lane.b32.xlu0 %v44, 32
  %v65 = vpop.permute.xlu0 %64
  %v66 = vsel %vm63, %v65, %v44
  %67 = vrot.lane.b32.xlu0 %v66, 32
  %v68 = vpop.permute.xlu0 %67
  %v69 = vsel %vm63, %v68, %v44
  %v70 = vsel %vm61, 1, 0
  %vm71 = vcmp.eq.s32.totalorder %v70, 1
  %73 = vrot.lane.b32.xlu0 %v69, 97
  %v74 = vpop.permute.xlu0 %73
  %v76 = vsel %vm71, 0.0, %v74
  %v77 = vsel %vm62, 1, 0
  %vm78 = vcmp.eq.s32.totalorder %v77, 1
  %79 = vrot.lane.b32.xlu0 %v69, 127
  %v80 = vpop.permute.xlu0 %79
  %v82 = vsel %vm78, 0.0, %v80
  %84 = vset.pattern.permute.xlu0 0
  %85 = vperm.xlu0 %84, %v46
  %v86 = vpop.permute.xlu0 %85
  %89 = vset.pattern.permute.xlu0 0
  %90 = vperm.xlu0 %89, %v45
  %v91 = vpop.permute.xlu0 %90
  %v93 = vlaneseq
  %v94 = vshrl.u32 %v93, 7
  %v95 = vsub.s32 0, %v94
  %v96 = vrot.slane %v76, %v95
  %v97 = vmul.f32 %v91, %v96
  %v98 = vadd.f32 %v86, %v97
  %99 = vset.pattern.permute.xlu0 1
  %100 = vperm.xlu0 %99, %v45
  %v101 = vpop.permute.xlu0 %100
  %v103 = vlaneseq
  %v104 = vshrl.u32 %v103, 7
  %v105 = vsub.s32 1, %v104
  %v106 = vrot.slane %v76, %v105
  %v107 = vmul.f32 %v101, %v106
  %v108 = vadd.f32 %v98, %v107
  %109 = vset.pattern.permute.xlu0 2
  %110 = vperm.xlu0 %109, %v45
  %v111 = vpop.permute.xlu0 %110
  %v113 = vlaneseq
  %v114 = vshrl.u32 %v113, 7
  %v115 = vsub.s32 2, %v114
  %v116 = vrot.slane %v76, %v115
  %v117 = vmul.f32 %v111, %v116
  %v118 = vadd.f32 %v108, %v117
  %119 = vset.pattern.permute.xlu0 3
  %120 = vperm.xlu0 %119, %v45
  %v121 = vpop.permute.xlu0 %120
  %v123 = vlaneseq
  %v124 = vshrl.u32 %v123, 7
  %v125 = vsub.s32 3, %v124
  %v126 = vrot.slane %v76, %v125
  %v127 = vmul.f32 %v121, %v126
  %v128 = vadd.f32 %v118, %v127
  %129 = vset.pattern.permute.xlu0 4
  %130 = vperm.xlu0 %129, %v45
  %v131 = vpop.permute.xlu0 %130
  %v133 = vlaneseq
  %v134 = vshrl.u32 %v133, 7
  %v135 = vsub.s32 4, %v134
  %v136 = vrot.slane %v76, %v135
  %v137 = vmul.f32 %v131, %v136
  %v138 = vadd.f32 %v128, %v137
  %139 = vset.pattern.permute.xlu0 5
  %140 = vperm.xlu0 %139, %v45
  %v141 = vpop.permute.xlu0 %140
  %v143 = vlaneseq
  %v144 = vshrl.u32 %v143, 7
  %v145 = vsub.s32 5, %v144
  %v146 = vrot.slane %v76, %v145
  %v147 = vmul.f32 %v141, %v146
  %v148 = vadd.f32 %v138, %v147
  %149 = vset.pattern.permute.xlu0 6
  %150 = vperm.xlu0 %149, %v45
  %v151 = vpop.permute.xlu0 %150
  %v153 = vlaneseq
  %v154 = vshrl.u32 %v153, 7
  %v155 = vsub.s32 6, %v154
  %v156 = vrot.slane %v76, %v155
  %v157 = vmul.f32 %v151, %v156
  %v158 = vadd.f32 %v148, %v157
  %159 = vset.pattern.permute.xlu0 7
  %160 = vperm.xlu0 %159, %v45
  %v161 = vpop.permute.xlu0 %160
  %v163 = vlaneseq
  %v164 = vshrl.u32 %v163, 7
  %v165 = vsub.s32 7, %v164
  %v166 = vrot.slane %v76, %v165
  %v167 = vmul.f32 %v161, %v166
  %v168 = vadd.f32 %v158, %v167
  %169 = vset.pattern.permute.xlu0 8
  %170 = vperm.xlu0 %169, %v45
  %v171 = vpop.permute.xlu0 %170
  %v173 = vlaneseq
  %v174 = vshrl.u32 %v173, 7
  %v175 = vsub.s32 0, %v174
  %v176 = vrot.slane %v44, %v175
  %v177 = vmul.f32 %v171, %v176
  %v178 = vadd.f32 %v168, %v177
  %179 = vset.pattern.permute.xlu0 9
  %180 = vperm.xlu0 %179, %v45
  %v181 = vpop.permute.xlu0 %180
  %v183 = vlaneseq
  %v184 = vshrl.u32 %v183, 7
  %v185 = vsub.s32 1, %v184
  %v186 = vrot.slane %v44, %v185
  %v187 = vmul.f32 %v181, %v186
  %v188 = vadd.f32 %v178, %v187
  %189 = vset.pattern.permute.xlu0 10
  %190 = vperm.xlu0 %189, %v45
  %v191 = vpop.permute.xlu0 %190
  %v193 = vlaneseq
  %v194 = vshrl.u32 %v193, 7
  %v195 = vsub.s32 2, %v194
  %v196 = vrot.slane %v44, %v195
  %v197 = vmul.f32 %v191, %v196
  %v198 = vadd.f32 %v188, %v197
  %199 = vset.pattern.permute.xlu0 11
  %200 = vperm.xlu0 %199, %v45
  %v201 = vpop.permute.xlu0 %200
  %v203 = vlaneseq
  %v204 = vshrl.u32 %v203, 7
  %v205 = vsub.s32 3, %v204
  %v206 = vrot.slane %v44, %v205
  %v207 = vmul.f32 %v201, %v206
  %v208 = vadd.f32 %v198, %v207
  %209 = vset.pattern.permute.xlu0 12
  %210 = vperm.xlu0 %209, %v45
  %v211 = vpop.permute.xlu0 %210
  %v213 = vlaneseq
  %v214 = vshrl.u32 %v213, 7
  %v215 = vsub.s32 4, %v214
  %v216 = vrot.slane %v44, %v215
  %v217 = vmul.f32 %v211, %v216
  %v218 = vadd.f32 %v208, %v217
  %219 = vset.pattern.permute.xlu0 13
  %220 = vperm.xlu0 %219, %v45
  %v221 = vpop.permute.xlu0 %220
  %v223 = vlaneseq
  %v224 = vshrl.u32 %v223, 7
  %v225 = vsub.s32 5, %v224
  %v226 = vrot.slane %v44, %v225
  %v227 = vmul.f32 %v221, %v226
  %v228 = vadd.f32 %v218, %v227
  %229 = vset.pattern.permute.xlu0 14
  %230 = vperm.xlu0 %229, %v45
  %v231 = vpop.permute.xlu0 %230
  %v233 = vlaneseq
  %v234 = vshrl.u32 %v233, 7
  %v235 = vsub.s32 6, %v234
  %v236 = vrot.slane %v44, %v235
  %v237 = vmul.f32 %v231, %v236
  %v238 = vadd.f32 %v228, %v237
  %239 = vset.pattern.permute.xlu0 15
  %240 = vperm.xlu0 %239, %v45
  %v241 = vpop.permute.xlu0 %240
  %v243 = vlaneseq
  %v244 = vshrl.u32 %v243, 7
  %v245 = vsub.s32 7, %v244
  %v246 = vrot.slane %v44, %v245
  %v247 = vmul.f32 %v241, %v246
  %v248 = vadd.f32 %v238, %v247
  %249 = vset.pattern.permute.xlu0 16
  %250 = vperm.xlu0 %249, %v45
  %v251 = vpop.permute.xlu0 %250
  %v253 = vlaneseq
  %v254 = vshrl.u32 %v253, 7
  %v255 = vsub.s32 0, %v254
  %v256 = vrot.slane %v82, %v255
  %v257 = vmul.f32 %v251, %v256
  %v258 = vadd.f32 %v248, %v257
  %259 = vset.pattern.permute.xlu0 17
  %260 = vperm.xlu0 %259, %v45
  %v261 = vpop.permute.xlu0 %260
  %v263 = vlaneseq
  %v264 = vshrl.u32 %v263, 7
  %v265 = vsub.s32 1, %v264
  %v266 = vrot.slane %v82, %v265
  %v267 = vmul.f32 %v261, %v266
  %v268 = vadd.f32 %v258, %v267
  %269 = vset.pattern.permute.xlu0 18
  %270 = vperm.xlu0 %269, %v45
  %v271 = vpop.permute.xlu0 %270
  %v273 = vlaneseq
  %v274 = vshrl.u32 %v273, 7
  %v275 = vsub.s32 2, %v274
  %v276 = vrot.slane %v82, %v275
  %v277 = vmul.f32 %v271, %v276
  %v278 = vadd.f32 %v268, %v277
  %279 = vset.pattern.permute.xlu0 19
  %280 = vperm.xlu0 %279, %v45
  %v281 = vpop.permute.xlu0 %280
  %v283 = vlaneseq
  %v284 = vshrl.u32 %v283, 7
  %v285 = vsub.s32 3, %v284
  %v286 = vrot.slane %v82, %v285
  %v287 = vmul.f32 %v281, %v286
  %v288 = vadd.f32 %v278, %v287
  %289 = vset.pattern.permute.xlu0 20
  %290 = vperm.xlu0 %289, %v45
  %v291 = vpop.permute.xlu0 %290
  %v293 = vlaneseq
  %v294 = vshrl.u32 %v293, 7
  %v295 = vsub.s32 4, %v294
  %v296 = vrot.slane %v82, %v295
  %v297 = vmul.f32 %v291, %v296
  %v298 = vadd.f32 %v288, %v297
  %299 = vset.pattern.permute.xlu0 21
  %300 = vperm.xlu0 %299, %v45
  %v301 = vpop.permute.xlu0 %300
  %v303 = vlaneseq
  %v304 = vshrl.u32 %v303, 7
  %v305 = vsub.s32 5, %v304
  %v306 = vrot.slane %v82, %v305
  %v307 = vmul.f32 %v301, %v306
  %v308 = vadd.f32 %v298, %v307
  %309 = vset.pattern.permute.xlu0 22
  %310 = vperm.xlu0 %309, %v45
  %v311 = vpop.permute.xlu0 %310
  %v313 = vlaneseq
  %v314 = vshrl.u32 %v313, 7
  %v315 = vsub.s32 6, %v314
  %v316 = vrot.slane %v82, %v315
  %v317 = vmul.f32 %v311, %v316
  %v318 = vadd.f32 %v308, %v317
  %319 = vset.pattern.permute.xlu0 23
  %320 = vperm.xlu0 %319, %v45
  %v321 = vpop.permute.xlu0 %320
  %v323 = vlaneseq
  %v324 = vshrl.u32 %v323, 7
  %v325 = vsub.s32 7, %v324
  %v326 = vrot.slane %v82, %v325
  %v327 = vmul.f32 %v321, %v326
  %v328 = vadd.f32 %v318, %v327
  %vm329 = vcmask 261120
  %330 = vst.msk [vmem:[%s5] sm:$0xff] %vm329, %v328
  %v331 = vld [vmem:[#allocation2] sm:$0xff]
  %v332 = vsel %vm329, %v328, 0.0
  %333 = vadd.xlane.f32.xlu0 %v332
  %v334 = vpop.xlane.xlu0 %333
  %v335 = vadd.f32 %v331, %v334
  %vm336 = vcmask 7168
  %337 = vst.msk [vmem:[#allocation2] sm:$0xff] %vm336, %v335
  %v338 = vld [vmem:[#allocation3] sm:$0xff]
  %v339 = vmul.f32 %v328, %v328
  %v340 = vsel %vm329, %v339, 0.0
  %341 = vadd.xlane.f32.xlu0 %v340
  %v342 = vpop.xlane.xlu0 %341
  %v343 = vadd.f32 %v338, %v342
  %344 = vst.msk [vmem:[#allocation3] sm:$0xff] %vm336, %v343
  // Predicated region
  $region26: #{conv_block_1d.4} parent=0 // pred_check
    %p345 = pneg %p22
  $region27: #{conv_block_1d.4} parent=0 // pred_check_branch
    %347 = sbr.rel (%p345) target = $region29
  $region28: #{conv_block_1d.4} parent=0 // pred_region
    %v348 = vld [vmem:[#allocation2] sm:$0xff]
    %v349 = vld [vmem:[#allocation3] sm:$0xff]
    %351 = vrot.lane.b32.xlu0 %v349, 1
    %v352 = vpop.permute.xlu0 %351
    %v354 = vsel %vm336, %v348, %v352
    %vm355 = vcmask 15360
    %356 = vst.msk [vmem:[%s6] sm:$0xff] %vm355, %v354
  $region29: #{conv_block_1d.4} parent=0 // pred_fallthru
    _
  // Predicated region
  $region30: #{conv_block_1d.4} parent=0 // pred_check
    _
  $region31: #{conv_block_1d.4} parent=0 // pred_check_branch
    %358 = sbr.rel (0) target = $region33
  $region32: #{conv_block_1d.4} parent=0 // pred_region
    _
  $region33: #{conv_block_1d.4} parent=0 // pred_fallthru
    _
  // Predicated region
  $region34: #{conv_block_1d.4} parent=0 // pred_check
    _
  $region35: #{conv_block_1d.4} parent=0 // pred_check_branch
    %360 = sbr.rel (0) target = $region37
  $region36: #{conv_block_1d.4} parent=0 // pred_region
    _
  $region37: #{conv_block_1d.4} parent=0 // pred_fallthru
    _
  // Predicated region
  $region38: #{conv_block_1d.4} parent=0 // pred_check
    _
  $region39: #{conv_block_1d.4} parent=0 // pred_check_branch
    %362 = sbr.rel (0) target = $region41
  $region40: #{conv_block_1d.4} parent=0 // pred_region
    _
  $region41: #{conv_block_1d.4} parent=0 // pred_fallthru
    _
  // Predicated region
  $region42: #{conv_block_1d.4} parent=0 // pred_check
    _
  $region43: #{conv_block_1d.4} parent=0 // pred_check_branch
    %364 = sbr.rel (0) target = $region45
  $region44: #{conv_block_1d.4} parent=0 // pred_region
    _
  $region45: #{conv_block_1d.4} parent=0 // pred_fallthru
    _

</llo_original>
